<compile_context>
chip_gen: v7x
topology: tpu7x:2x2x1
jax: 0.10.0
libtpu: 0.0.40
codegen_flags: <defaults>
</compile_context>

<pallas_src>
import functools

import jax
import jax.numpy as jnp
from jax.experimental import pallas as pl
from jax.experimental.pallas import tpu as pltpu

EPS = 1e-5
NEG_SLOPE = 0.2
VMEM_LIMIT = 32 * 1024 * 1024      # safe on v5e/v6e (128 MiB) and v7x (64 MiB)
CONV1_MAX_TILE = 2048              # row-pairs per tile (= 4096 conv rows, <1 MiB blocks)
CONV2_MAX_TILE = 512               # spatial rows per tile


# ---------------------------------------------------------------------------
# Small helpers
# ---------------------------------------------------------------------------
def _tile_rows(m, max_tile):
    """(tile, padded_m): one full block when it fits, else multiple-of-8 tiles
    with m zero-padded up to a tile multiple (no whole-array fallback)."""
    if m <= max_tile:
        return m, m
    tile = max(8, (max_tile // 8) * 8)
    return tile, ((m + tile - 1) // tile) * tile


def _widen(w):
    """(K, C) -> (2K, 2C) block-diagonal [[w, 0], [0, w]].

    With row-paired patches (M/2, 2K), pairs @ widen(w) equals the original
    (M, K) @ (K, C) matmul laid out as (M/2, 2C): bit-identical to the (M, C)
    row-major result, but lane-dense (2C == 128)."""
    z = jnp.zeros_like(w)
    return jnp.concatenate(
        [jnp.concatenate([w, z], axis=1), jnp.concatenate([z, w], axis=1)], axis=0)


def im2col(x_nhwc, k=3, stride=2, pad=1):
    """3x3 / stride-2 / pad-1 patch extraction (trace-time XLA glue)."""
    n, h, w, c = x_nhwc.shape
    xp = jnp.pad(x_nhwc, ((0, 0), (pad, pad), (pad, pad), (0, 0)))
    ho = (h + 2 * pad - k) // stride + 1
    wo = (w + 2 * pad - k) // stride + 1
    cols = []
    for di in range(k):
        for dj in range(k):
            cols.append(
                xp[:, di:di + stride * ho:stride, dj:dj + stride * wo:stride, :])
    patches = jnp.stack(cols, axis=3)                  # (n, ho, wo, k*k, c)
    return patches.reshape(n * ho * wo, k * k * c), (n, ho, wo)


def _conv_out(n):
    return (n + 2 - 3) // 2 + 1                        # 3x3, stride 2, pad 1


# ---------------------------------------------------------------------------
# Kernel 1: conv matmul + BN(train) + LeakyReLU (lane-dense paired rows)
# ---------------------------------------------------------------------------
def conv_bn_lrelu_kernel(pw_ref, ww_ref, g_ref, b_ref, o_ref, stats_ref, *, m_rows):
    """grid = (phase, row-pair tiles).

    phase 0: accumulate per-channel sum / sum-of-squares of y = patches @ W.
    phase 1: recompute y (cheap vs. an HBM round-trip) and store
             LeakyReLU(y * scale + shift) in bf16, lane-dense (.., 128).
    """
    phase = pl.program_id(0)
    i = pl.program_id(1)

    @pl.when((phase == 0) & (i == 0))
    def _init_stats():
        stats_ref[...] = jnp.zeros_like(stats_ref)

    # (TM, 2K) x (2K, 128) -> (TM, 128); f32 MXU accumulation.
    yw = jnp.dot(pw_ref[...], ww_ref[...], preferred_element_type=jnp.float32)

    @pl.when(phase == 0)
    def _accumulate():
        stats_ref[0:1, :] += jnp.sum(yw, axis=0, keepdims=True)
        stats_ref[1:2, :] += jnp.sum(yw * yw, axis=0, keepdims=True)

    @pl.when(phase == 1)
    def _normalize():
        half = stats_ref.shape[-1] // 2
        # Lanes [0,64) hold even-row partials, [64,128) odd rows: fold the two
        # halves with an XLU roll (keeps everything 128-wide, no concatenate).
        tot = stats_ref[...]
        tot = tot + pltpu.roll(tot, shift=half, axis=1)
        inv_m = 1.0 / m_rows
        mean = tot[0:1, :] * inv_m
        # Single-pass (E[y^2]-mean^2) biased variance in f32; deliberate,
        # documented numerical deviation from a two-pass BatchNorm.
        var = jnp.maximum(tot[1:2, :] * inv_m - mean * mean, 0.0)
        scale = g_ref[...] * jax.lax.rsqrt(var + EPS)
        shift = b_ref[...] - mean * scale
        h = yw * scale + shift
        o_ref[...] = jnp.where(h >= 0.0, h, NEG_SLOPE * h).astype(o_ref.dtype)


def conv_bn_lrelu(patches, w, gamma, beta, *, max_tile=CONV1_MAX_TILE):
    """patches (M, K) bf16, w (K, 64) bf16 -> LeakyReLU(BN(patches @ w)) (M, 64) bf16."""
    m, k = patches.shape
    c = w.shape[1]
    mw = (m + 1) // 2                                   # row pairs
    tile, mwp = _tile_rows(mw, max_tile)
    mp = 2 * mwp
    if mp != m:                                         # zero rows: no effect on BN sums
        patches = jnp.pad(patches, ((0, mp - m), (0, 0)))
    pw = patches.reshape(mwp, 2 * k)                    # bit-identical row pairing
    ww = _widen(w)                                      # (2K, 2C) block-diagonal
    g2 = jnp.concatenate([gamma, gamma]).reshape(1, 2 * c).astype(jnp.float32)
    b2 = jnp.concatenate([beta, beta]).reshape(1, 2 * c).astype(jnp.float32)
    nt = mwp // tile

    kernel = functools.partial(conv_bn_lrelu_kernel, m_rows=float(m))
    hw = pl.pallas_call(
        kernel,
        out_shape=jax.ShapeDtypeStruct((mwp, 2 * c), jnp.bfloat16),
        grid=(2, nt),
        in_specs=[
            pl.BlockSpec((tile, 2 * k), lambda p, i: (i, 0)),
            pl.BlockSpec((2 * k, 2 * c), lambda p, i: (0, 0)),
            pl.BlockSpec((1, 2 * c), lambda p, i: (0, 0)),
            pl.BlockSpec((1, 2 * c), lambda p, i: (0, 0)),
        ],
        # Phase 0 never writes the output: keep its block index pinned at 0 so
        # no garbage block is ever flushed; phase 1 walks the real tiles.
        out_specs=pl.BlockSpec((tile, 2 * c), lambda p, i: (i * p, 0)),
        scratch_shapes=[pltpu.VMEM((2, 2 * c), jnp.float32)],
        compiler_params=pltpu.CompilerParams(
            dimension_semantics=("arbitrary", "arbitrary"),
            vmem_limit_bytes=VMEM_LIMIT),
    )(pw, ww, g2, b2)
    return hw.reshape(mp, c)[:m]


# ---------------------------------------------------------------------------
# Kernel 2: conv2 + BN(train) + LeakyReLU + Linear(flatten folded) + Sigmoid
# ---------------------------------------------------------------------------
def conv_bn_lrelu_linear_sig_kernel(p_ref, w_ref, g_ref, b_ref, wl_ref, bl_ref,
                                    o_ref, stats_ref, *, m_rows):
    """grid = (phase, batch, spatial tiles).

    phase 0: accumulate BN statistics of y = patches @ W over the whole batch.
    phase 1: recompute y, normalize + LeakyReLU, reduce against the folded
             linear weight into a per-batch resident accumulator, sigmoid last.
    """
    phase = pl.program_id(0)
    s = pl.program_id(2)
    last_s = pl.num_programs(2) - 1

    @pl.when((phase == 0) & (pl.program_id(1) == 0) & (s == 0))
    def _init_stats():
        stats_ref[...] = jnp.zeros_like(stats_ref)

    y = jnp.dot(p_ref[0], w_ref[...], preferred_element_type=jnp.float32)  # (TS, C)

    @pl.when(phase == 0)
    def _accumulate():
        stats_ref[0:1, :] += jnp.sum(y, axis=0, keepdims=True)
        stats_ref[1:2, :] += jnp.sum(y * y, axis=0, keepdims=True)

    @pl.when((phase == 1) & (s == 0))
    def _init_out():
        o_ref[...] = jnp.zeros_like(o_ref)

    @pl.when(phase == 1)
    def _normalize_and_reduce():
        inv_m = 1.0 / m_rows
        mean = stats_ref[0:1, :] * inv_m
        var = jnp.maximum(stats_ref[1:2, :] * inv_m - mean * mean, 0.0)
        scale = g_ref[...] * jax.lax.rsqrt(var + EPS)
        shift = b_ref[...] - mean * scale
        h = y * scale + shift
        h = jnp.where(h >= 0.0, h, NEG_SLOPE * h)
        o_ref[...] += jnp.sum(h * wl_ref[...])          # partial dot, this batch

    @pl.when((phase == 1) & (s == last_s))
    def _finalize():
        z = o_ref[...] + bl_ref[0]
        o_ref[...] = 1.0 / (1.0 + jnp.exp(-z))


def conv_bn_lrelu_linear_sigmoid(patches_nsc, w, gamma, beta, wl, bl,
                                 *, max_tile=CONV2_MAX_TILE):
    """patches (N,S,K) bf16, w (K,64) bf16, wl (S,64) f32, bl (1,) f32 -> (N,1) f32."""
    n, s_true, k = patches_nsc.shape
    c = w.shape[1]
    ts, sp = _tile_rows(s_true, max_tile)
    if sp != s_true:
        # Zero patch rows contribute nothing to the BN sums; zero wl rows
        # contribute nothing to the linear reduction.
        patches_nsc = jnp.pad(patches_nsc, ((0, 0), (0, sp - s_true), (0, 0)))
        wl = jnp.pad(wl, ((0, sp - s_true), (0, 0)))
    ns = sp // ts

    kernel = functools.partial(conv_bn_lrelu_linear_sig_kernel,
                               m_rows=float(n * s_true))
    out = pl.pallas_call(
        kernel,
        out_shape=jax.ShapeDtypeStruct((n, 8, 128), jnp.float32),
        grid=(2, n, ns),
        in_specs=[
            pl.BlockSpec((1, ts, k), lambda p, b, t: (b, t, 0)),
            pl.BlockSpec((k, c), lambda p, b, t: (0, 0)),
            pl.BlockSpec((1, c), lambda p, b, t: (0, 0)),
            pl.BlockSpec((1, c), lambda p, b, t: (0, 0)),
            pl.BlockSpec((ts, c), lambda p, b, t: (t, 0)),
            pl.BlockSpec(memory_space=pltpu.MemorySpace.SMEM),   # scalar bias
        ],
        # Per-batch resident (1,8,128) accumulator blocks; pinned to block 0
        # during phase 0 (never written there) so no garbage block is flushed.
        out_specs=pl.BlockSpec((1, 8, 128), lambda p, b, t: (p * b, 0, 0)),
        scratch_shapes=[pltpu.VMEM((2, c), jnp.float32)],
        # NOTE: the stats scratch is shared across the grid, so the batch axis
        # must stay "arbitrary" (a "parallel" axis would give each TensorCore
        # its own partial statistics).
        compiler_params=pltpu.CompilerParams(
            dimension_semantics=("arbitrary", "arbitrary", "arbitrary"),
            vmem_limit_bytes=VMEM_LIMIT),
    )(patches_nsc, w,
      gamma.reshape(1, c).astype(jnp.float32),
      beta.reshape(1, c).astype(jnp.float32),
      wl.astype(jnp.float32),
      bl.reshape(1).astype(jnp.float32))
    return out[:, 0, :1]


# ---------------------------------------------------------------------------
# Model: parameter init + forward
# ---------------------------------------------------------------------------
def init_params(key, channels, width, height):
    k1, k2, k3, k4 = jax.random.split(key, 4)
    ho1, wo1 = _conv_out(height), _conv_out(width)
    ho2, wo2 = _conv_out(ho1), _conv_out(wo1)
    # Conv weights (kh, kw, Cin, Cout) flattened to (kh*kw*Cin, Cout); matches
    # the im2col feature order.  Conv biases are omitted: a per-channel
    # constant before training-mode BatchNorm is exactly cancelled by the mean
    # subtraction.
    cw1 = 0.1 * jax.random.normal(k1, (3, 3, channels, 64), jnp.float32)
    cw2 = 0.1 * jax.random.normal(k2, (3, 3, 64, 64), jnp.float32)
    # Linear weight in PyTorch NCHW-flatten row order; the flatten permutation
    # is folded into it here (free), so the kernel consumes NHWC directly.
    flat = 64 * ho2 * wo2
    wl_pt = 0.05 * jax.random.normal(k3, (flat, 1), jnp.float32)
    wl_hwc = wl_pt.reshape(64, ho2, wo2).transpose(1, 2, 0).reshape(ho2 * wo2, 64)
    return {
        "w1": cw1.reshape(9 * channels, 64),
        "g1": jnp.ones((64,), jnp.float32),      # BatchNorm2d affine defaults
        "be1": jnp.zeros((64,), jnp.float32),
        "w2": cw2.reshape(9 * 64, 64),
        "g2": jnp.ones((64,), jnp.float32),
        "be2": jnp.zeros((64,), jnp.float32),
        "wl_hwc": wl_hwc,
        "bl": 0.1 * jax.random.normal(k4, (1,), jnp.float32),
    }


@jax.jit
def discriminator_forward(x_nchw, params):
    # NCHW -> NHWC, bf16 matmul inputs.
    x = jnp.transpose(x_nchw, (0, 2, 3, 1)).astype(jnp.bfloat16)

    # Block 1: conv(3x3,s2,p1) + BN(train) + LeakyReLU, fully fused (1 call).
    p1, (n, ho1, wo1) = im2col(x)
    act1 = conv_bn_lrelu(p1, params["w1"].astype(jnp.bfloat16),
                         params["g1"], params["be1"])
    act1 = act1.reshape(n, ho1, wo1, 64)

    # Block 2 + Flatten(folded) + Linear + Sigmoid, fully fused (1 call).
    p2, (n, ho2, wo2) = im2col(act1)
    p2 = p2.reshape(n, ho2 * wo2, 9 * 64)
    return conv_bn_lrelu_linear_sigmoid(
        p2, params["w2"].astype(jnp.bfloat16), params["g2"], params["be2"],
        params["wl_hwc"], params["bl"])


# ---------------------------------------------------------------------------
# Pure-JAX f32 reference for a tolerance check
# ---------------------------------------------------------------------------
def _reference_forward(x_nchw, params, channels):
    x = jnp.transpose(x_nchw, (0, 2, 3, 1))
    w1 = params["w1"].reshape(3, 3, channels, 64)
    w2 = params["w2"].reshape(3, 3, 64, 64)

    def block(h, w, g, b):
        y = jax.lax.conv_general_dilated(
            h, w, window_strides=(2, 2), padding=((1, 1), (1, 1)),
            dimension_numbers=("NHWC", "HWIO", "NHWC"))
        mean = jnp.mean(y, axis=(0, 1, 2))
        var = jnp.mean((y - mean) ** 2, axis=(0, 1, 2))
        yn = (y - mean) * jax.lax.rsqrt(var + EPS) * g + b
        return jnp.where(yn >= 0.0, yn, NEG_SLOPE * yn)

    h1 = block(x, w1, params["g1"], params["be1"])
    h2 = block(h1, w2, params["g2"], params["be2"])
    n = h2.shape[0]
    logit = jnp.einsum("nsc,sc->n", h2.reshape(n, -1, 64), params["wl_hwc"])
    return jax.nn.sigmoid(logit + params["bl"][0])[:, None]


if __name__ == "__main__":
    batch, channels, width, height = 2, 4, 16, 16
    key = jax.random.PRNGKey(0)
    kx, kp = jax.random.split(key)
    x = jax.random.normal(kx, (batch, channels, height, width), jnp.float32)  # NCHW
    params = init_params(kp, channels, width, height)

    out = jax.block_until_ready(discriminator_forward(x, params))

    assert out.shape == (batch, 1), out.shape
    assert bool(jnp.all(jnp.isfinite(out)))
    assert bool(jnp.all((out >= 0.0) & (out <= 1.0)))

    # Tolerance check vs. the pure-JAX f32 reference (kernel uses bf16 matmul
    # inputs and a single-pass variance, so exact equality is not expected).
    ref = _reference_forward(x, params, channels)
    assert bool(jnp.max(jnp.abs(out - ref)) < 0.06), (out, ref)

    print("KERNEL_OK")
</pallas_src>

<mosaic_0001>
module attributes {stable_mosaic.version = 11 : i64} {
  func.func @conv_bn_lrelu_kernel(%arg0: i32, %arg1: i32, %arg2: memref<64x72xbf16, #tpu.memory_space<vmem>>, %arg3: memref<72x128xbf16, #tpu.memory_space<vmem>>, %arg4: memref<1x128xf32, #tpu.memory_space<vmem>>, %arg5: memref<1x128xf32, #tpu.memory_space<vmem>>, %arg6: memref<64x128xbf16, #tpu.memory_space<vmem>>, %arg7: memref<2x128xf32, #tpu.memory_space<vmem>>) attributes {dimension_semantics = [#tpu.dimension_semantics<arbitrary>, #tpu.dimension_semantics<arbitrary>], iteration_bounds = array<i64: 2, 1>, scalar_prefetch = 0 : i64, scratch_operands = 1 : i64, tpu.core_type = #tpu.core_type<tc>, window_params = [{transform_indices = @transform_0, window_bounds = array<i64: 64, 72>}, {pipeline_mode = #tpu.pipeline_mode<synchronous>, transform_indices = @transform_1, window_bounds = array<i64: 72, 128>}, {pipeline_mode = #tpu.pipeline_mode<synchronous>, transform_indices = @transform_2, window_bounds = array<i64: 1, 128>}, {pipeline_mode = #tpu.pipeline_mode<synchronous>, transform_indices = @transform_3, window_bounds = array<i64: 1, 128>}, {transform_indices = @transform_4, window_bounds = array<i64: 64, 128>}]} {
    %c0_i32 = arith.constant 0 : i32
    %0 = arith.cmpi eq, %arg0, %c0_i32 : i32
    %c0_i32_0 = arith.constant 0 : i32
    %1 = arith.cmpi eq, %arg1, %c0_i32_0 : i32
    %2 = arith.andi %0, %1 : i1
    %3 = arith.extui %2 : i1 to i32
    %c0_i32_1 = arith.constant 0 : i32
    %4 = arith.cmpi ne, %3, %c0_i32_1 : i32
    scf.if %4 {
      %cst_8 = arith.constant 0.000000e+00 : f32
      %14 = vector.broadcast %cst_8 : f32 to vector<2x128xf32>
      %c0_9 = arith.constant 0 : index
      %c0_10 = arith.constant 0 : index
      %15 = vector.load %arg7[%c0_9, %c0_10] : memref<2x128xf32, #tpu.memory_space<vmem>>, vector<2x128xf32>
      tpu.vector_store %arg7[%c0_9, %c0_10], %14 {strides = array<i32>} : memref<2x128xf32, #tpu.memory_space<vmem>>, vector<2x128xf32>,
    } else {
    }
    %c0 = arith.constant 0 : index
    %c0_2 = arith.constant 0 : index
    %5 = vector.load %arg2[%c0, %c0_2] : memref<64x72xbf16, #tpu.memory_space<vmem>>, vector<64x72xbf16>
    %c0_3 = arith.constant 0 : index
    %c0_4 = arith.constant 0 : index
    %6 = vector.load %arg3[%c0_3, %c0_4] : memref<72x128xbf16, #tpu.memory_space<vmem>>, vector<72x128xbf16>
    %cst = arith.constant dense<0.000000e+00> : vector<64x128xf32>
    %7 = tpu.matmul %5, %6, %cst {dimension_numbers = #tpu.dot_dimension_numbers<[1], [0], [0], [1], [0, 0, 1, 1], [], []>} : vector<64x72xbf16>, vector<72x128xbf16>, vector<64x128xf32> -> vector<64x128xf32>
    %c0_i32_5 = arith.constant 0 : i32
    %8 = arith.cmpi eq, %arg0, %c0_i32_5 : i32
    %9 = arith.extui %8 : i1 to i32
    %c0_i32_6 = arith.constant 0 : i32
    %10 = arith.cmpi ne, %9, %c0_i32_6 : i32
    scf.if %10 {
      %c0_8 = arith.constant 0 : index
      %c0_9 = arith.constant 0 : index
      %14 = vector.load %arg7[%c0_8, %c0_9] : memref<2x128xf32, #tpu.memory_space<vmem>>, vector<1x128xf32>
      %cst_10 = arith.constant dense<0.000000e+00> : vector<128xf32>
      %15 = vector.multi_reduction <add>, %7, %cst_10 [0] : vector<64x128xf32> to vector<128xf32>
      %16 = vector.shape_cast %15 : vector<128xf32> to vector<1x128xf32>
      %17 = arith.addf %14, %16 : vector<1x128xf32>
      %c0_11 = arith.constant 0 : index
      %c0_12 = arith.constant 0 : index
      %18 = vector.load %arg7[%c0_11, %c0_12] : memref<2x128xf32, #tpu.memory_space<vmem>>, vector<1x128xf32>
      tpu.vector_store %arg7[%c0_11, %c0_12], %17 {strides = array<i32>} : memref<2x128xf32, #tpu.memory_space<vmem>>, vector<1x128xf32>,
      %c1 = arith.constant 1 : index
      %c0_13 = arith.constant 0 : index
      %19 = vector.load %arg7[%c1, %c0_13] : memref<2x128xf32, #tpu.memory_space<vmem>>, vector<1x128xf32>
      %20 = arith.mulf %7, %7 : vector<64x128xf32>
      %cst_14 = arith.constant dense<0.000000e+00> : vector<128xf32>
      %21 = vector.multi_reduction <add>, %20, %cst_14 [0] : vector<64x128xf32> to vector<128xf32>
      %22 = vector.shape_cast %21 : vector<128xf32> to vector<1x128xf32>
      %23 = arith.addf %19, %22 : vector<1x128xf32>
      %c1_15 = arith.constant 1 : index
      %c0_16 = arith.constant 0 : index
      %24 = vector.load %arg7[%c1_15, %c0_16] : memref<2x128xf32, #tpu.memory_space<vmem>>, vector<1x128xf32>
      tpu.vector_store %arg7[%c1_15, %c0_16], %23 {strides = array<i32>} : memref<2x128xf32, #tpu.memory_space<vmem>>, vector<1x128xf32>,
    } else {
    }
    %c1_i32 = arith.constant 1 : i32
    %11 = arith.cmpi eq, %arg0, %c1_i32 : i32
    %12 = arith.extui %11 : i1 to i32
    %c0_i32_7 = arith.constant 0 : i32
    %13 = arith.cmpi ne, %12, %c0_i32_7 : i32
    scf.if %13 {
      %c0_8 = arith.constant 0 : index
      %c0_9 = arith.constant 0 : index
      %14 = vector.load %arg7[%c0_8, %c0_9] : memref<2x128xf32, #tpu.memory_space<vmem>>, vector<2x128xf32>
      %c64_i32 = arith.constant 64 : i32
      %15 = tpu.dynamic_rotate %14 by %c64_i32 dim 1 : vector<2x128xf32>, i32 -> vector<2x128xf32>
      %16 = arith.addf %14, %15 : vector<2x128xf32>
      %17 = vector.extract_strided_slice %16 {offsets = [0, 0], sizes = [1, 128], strides = [1, 1]} : vector<2x128xf32> to vector<1x128xf32>
      %cst_10 = arith.constant 7.812500e-03 : f32
      %18 = vector.broadcast %cst_10 : f32 to vector<1x128xf32>
      %19 = arith.mulf %17, %18 : vector<1x128xf32>
      %20 = vector.extract_strided_slice %16 {offsets = [1, 0], sizes = [1, 128], strides = [1, 1]} : vector<2x128xf32> to vector<1x128xf32>
      %cst_11 = arith.constant 7.812500e-03 : f32
      %21 = vector.broadcast %cst_11 : f32 to vector<1x128xf32>
      %22 = arith.mulf %20, %21 : vector<1x128xf32>
      %23 = arith.mulf %19, %19 : vector<1x128xf32>
      %24 = arith.subf %22, %23 : vector<1x128xf32>
      %cst_12 = arith.constant 0.000000e+00 : f32
      %25 = vector.broadcast %cst_12 : f32 to vector<1x128xf32>
      %26 = arith.maximumf %24, %25 : vector<1x128xf32>
      %c0_13 = arith.constant 0 : index
      %c0_14 = arith.constant 0 : index
      %27 = vector.load %arg4[%c0_13, %c0_14] : memref<1x128xf32, #tpu.memory_space<vmem>>, vector<1x128xf32>
      %cst_15 = arith.constant 9.99999974E-6 : f32
      %28 = vector.broadcast %cst_15 : f32 to vector<1x128xf32>
      %29 = arith.addf %26, %28 : vector<1x128xf32>
      %30 = math.rsqrt %29 : vector<1x128xf32>
      %31 = arith.mulf %27, %30 : vector<1x128xf32>
      %c0_16 = arith.constant 0 : index
      %c0_17 = arith.constant 0 : index
      %32 = vector.load %arg5[%c0_16, %c0_17] : memref<1x128xf32, #tpu.memory_space<vmem>>, vector<1x128xf32>
      %33 = arith.mulf %19, %31 : vector<1x128xf32>
      %34 = arith.subf %32, %33 : vector<1x128xf32>
      %35 = vector.broadcast %31 : vector<1x128xf32> to vector<64x128xf32>
      %36 = arith.mulf %7, %35 : vector<64x128xf32>
      %37 = vector.broadcast %34 : vector<1x128xf32> to vector<64x128xf32>
      %38 = arith.addf %36, %37 : vector<64x128xf32>
      %cst_18 = arith.constant 0.000000e+00 : f32
      %39 = vector.broadcast %cst_18 : f32 to vector<64x128xf32>
      %40 = arith.cmpf oge, %38, %39 : vector<64x128xf32>
      %cst_19 = arith.constant 2.000000e-01 : f32
      %41 = vector.broadcast %cst_19 : f32 to vector<64x128xf32>
      %42 = arith.mulf %41, %38 : vector<64x128xf32>
      %43 = arith.select %40, %38, %42 : vector<64x128xi1>, vector<64x128xf32>
      %44 = arith.truncf %43 : vector<64x128xf32> to vector<64x128xbf16>
      %c0_20 = arith.constant 0 : index
      %c0_21 = arith.constant 0 : index
      %45 = vector.load %arg6[%c0_20, %c0_21] : memref<64x128xbf16, #tpu.memory_space<vmem>>, vector<64x128xbf16>
      tpu.vector_store %arg6[%c0_20, %c0_21], %44 {strides = array<i32>} : memref<64x128xbf16, #tpu.memory_space<vmem>>, vector<64x128xbf16>,
    } else {
    }
    return
  }
  func.func @transform_0(%arg0: i32, %arg1: i32) -> (i32, i32) {
    %c0_i32 = arith.constant 0 : i32
    %c0_i32_0 = arith.constant 0 : i32
    return %arg1, %c0_i32 : i32, i32
  }
  func.func @transform_1(%arg0: i32, %arg1: i32) -> (i32, i32) {
    %c0_i32 = arith.constant 0 : i32
    %c0_i32_0 = arith.constant 0 : i32
    %c0_i32_1 = arith.constant 0 : i32
    return %c0_i32, %c0_i32_0 : i32, i32
  }
  func.func @transform_2(%arg0: i32, %arg1: i32) -> (i32, i32) {
    %c0_i32 = arith.constant 0 : i32
    %c0_i32_0 = arith.constant 0 : i32
    %c0_i32_1 = arith.constant 0 : i32
    return %c0_i32, %c0_i32_0 : i32, i32
  }
  func.func @transform_3(%arg0: i32, %arg1: i32) -> (i32, i32) {
    %c0_i32 = arith.constant 0 : i32
    %c0_i32_0 = arith.constant 0 : i32
    %c0_i32_1 = arith.constant 0 : i32
    return %c0_i32, %c0_i32_0 : i32, i32
  }
  func.func @transform_4(%arg0: i32, %arg1: i32) -> (i32, i32) {
    %0 = arith.muli %arg1, %arg0 : i32
    %c0_i32 = arith.constant 0 : i32
    %c0_i32_0 = arith.constant 0 : i32
    return %0, %c0_i32 : i32, i32
  }
}

module attributes {stable_mosaic.version = 11 : i64} {
  func.func @conv_bn_lrelu_linear_sig_kernel(%arg0: i32, %arg1: i32, %arg2: i32, %arg3: memref<1x16x576xbf16, #tpu.memory_space<vmem>>, %arg4: memref<576x64xbf16, #tpu.memory_space<vmem>>, %arg5: memref<1x64xf32, #tpu.memory_space<vmem>>, %arg6: memref<1x64xf32, #tpu.memory_space<vmem>>, %arg7: memref<16x64xf32, #tpu.memory_space<vmem>>, %arg8: memref<1xf32, #tpu.memory_space<smem>>, %arg9: memref<1x8x128xf32, #tpu.memory_space<vmem>>, %arg10: memref<2x64xf32, #tpu.memory_space<vmem>>) attributes {dimension_semantics = [#tpu.dimension_semantics<arbitrary>, #tpu.dimension_semantics<arbitrary>, #tpu.dimension_semantics<arbitrary>], iteration_bounds = array<i64: 2, 2, 1>, scalar_prefetch = 0 : i64, scratch_operands = 1 : i64, tpu.core_type = #tpu.core_type<tc>, window_params = [{transform_indices = @transform_0, window_bounds = array<i64: 1, 16, 576>}, {pipeline_mode = #tpu.pipeline_mode<synchronous>, transform_indices = @transform_1, window_bounds = array<i64: 576, 64>}, {pipeline_mode = #tpu.pipeline_mode<synchronous>, transform_indices = @transform_2, window_bounds = array<i64: 1, 64>}, {pipeline_mode = #tpu.pipeline_mode<synchronous>, transform_indices = @transform_3, window_bounds = array<i64: 1, 64>}, {transform_indices = @transform_4, window_bounds = array<i64: 16, 64>}, {transform_indices = @transform_5, window_bounds = array<i64: 1>}, {transform_indices = @transform_6, window_bounds = array<i64: 1, 8, 128>}]} {
    %c0_i32 = arith.constant 0 : i32
    %0 = arith.cmpi eq, %arg0, %c0_i32 : i32
    %c0_i32_0 = arith.constant 0 : i32
    %1 = arith.cmpi eq, %arg1, %c0_i32_0 : i32
    %2 = arith.andi %0, %1 : i1
    %c0_i32_1 = arith.constant 0 : i32
    %3 = arith.cmpi eq, %arg2, %c0_i32_1 : i32
    %4 = arith.andi %2, %3 : i1
    %5 = arith.extui %4 : i1 to i32
    %c0_i32_2 = arith.constant 0 : i32
    %6 = arith.cmpi ne, %5, %c0_i32_2 : i32
    scf.if %6 {
      %cst_16 = arith.constant 0.000000e+00 : f32
      %27 = vector.broadcast %cst_16 : f32 to vector<2x64xf32>
      %c0_17 = arith.constant 0 : index
      %c0_18 = arith.constant 0 : index
      %28 = vector.load %arg10[%c0_17, %c0_18] : memref<2x64xf32, #tpu.memory_space<vmem>>, vector<2x64xf32>
      tpu.vector_store %arg10[%c0_17, %c0_18], %27 {strides = array<i32>} : memref<2x64xf32, #tpu.memory_space<vmem>>, vector<2x64xf32>,
    } else {
    }
    %c0 = arith.constant 0 : index
    %c0_3 = arith.constant 0 : index
    %c0_4 = arith.constant 0 : index
    %7 = vector.load %arg3[%c0, %c0_3, %c0_4] : memref<1x16x576xbf16, #tpu.memory_space<vmem>>, vector<1x16x576xbf16>
    %8 = vector.shape_cast %7 : vector<1x16x576xbf16> to vector<16x576xbf16>
    %c0_5 = arith.constant 0 : index
    %c0_6 = arith.constant 0 : index
    %9 = vector.load %arg4[%c0_5, %c0_6] : memref<576x64xbf16, #tpu.memory_space<vmem>>, vector<576x64xbf16>
    %cst = arith.constant dense<0.000000e+00> : vector<16x64xf32>
    %10 = tpu.matmul %8, %9, %cst {dimension_numbers = #tpu.dot_dimension_numbers<[1], [0], [0], [1], [0, 0, 1, 1], [], []>} : vector<16x576xbf16>, vector<576x64xbf16>, vector<16x64xf32> -> vector<16x64xf32>
    %c0_i32_7 = arith.constant 0 : i32
    %11 = arith.cmpi eq, %arg0, %c0_i32_7 : i32
    %12 = arith.extui %11 : i1 to i32
    %c0_i32_8 = arith.constant 0 : i32
    %13 = arith.cmpi ne, %12, %c0_i32_8 : i32
    scf.if %13 {
      %c0_16 = arith.constant 0 : index
      %c0_17 = arith.constant 0 : index
      %27 = vector.load %arg10[%c0_16, %c0_17] : memref<2x64xf32, #tpu.memory_space<vmem>>, vector<1x64xf32>
      %cst_18 = arith.constant dense<0.000000e+00> : vector<64xf32>
      %28 = vector.multi_reduction <add>, %10, %cst_18 [0] : vector<16x64xf32> to vector<64xf32>
      %29 = vector.shape_cast %28 : vector<64xf32> to vector<1x64xf32>
      %30 = arith.addf %27, %29 : vector<1x64xf32>
      %c0_19 = arith.constant 0 : index
      %c0_20 = arith.constant 0 : index
      %31 = vector.load %arg10[%c0_19, %c0_20] : memref<2x64xf32, #tpu.memory_space<vmem>>, vector<1x64xf32>
      tpu.vector_store %arg10[%c0_19, %c0_20], %30 {strides = array<i32>} : memref<2x64xf32, #tpu.memory_space<vmem>>, vector<1x64xf32>,
      %c1 = arith.constant 1 : index
      %c0_21 = arith.constant 0 : index
      %32 = vector.load %arg10[%c1, %c0_21] : memref<2x64xf32, #tpu.memory_space<vmem>>, vector<1x64xf32>
      %33 = arith.mulf %10, %10 : vector<16x64xf32>
      %cst_22 = arith.constant dense<0.000000e+00> : vector<64xf32>
      %34 = vector.multi_reduction <add>, %33, %cst_22 [0] : vector<16x64xf32> to vector<64xf32>
      %35 = vector.shape_cast %34 : vector<64xf32> to vector<1x64xf32>
      %36 = arith.addf %32, %35 : vector<1x64xf32>
      %c1_23 = arith.constant 1 : index
      %c0_24 = arith.constant 0 : index
      %37 = vector.load %arg10[%c1_23, %c0_24] : memref<2x64xf32, #tpu.memory_space<vmem>>, vector<1x64xf32>
      tpu.vector_store %arg10[%c1_23, %c0_24], %36 {strides = array<i32>} : memref<2x64xf32, #tpu.memory_space<vmem>>, vector<1x64xf32>,
    } else {
    }
    %c1_i32 = arith.constant 1 : i32
    %14 = arith.cmpi eq, %arg0, %c1_i32 : i32
    %c0_i32_9 = arith.constant 0 : i32
    %15 = arith.cmpi eq, %arg2, %c0_i32_9 : i32
    %16 = arith.andi %14, %15 : i1
    %17 = arith.extui %16 : i1 to i32
    %c0_i32_10 = arith.constant 0 : i32
    %18 = arith.cmpi ne, %17, %c0_i32_10 : i32
    scf.if %18 {
      %cst_16 = arith.constant 0.000000e+00 : f32
      %27 = vector.broadcast %cst_16 : f32 to vector<1x8x128xf32>
      %c0_17 = arith.constant 0 : index
      %c0_18 = arith.constant 0 : index
      %c0_19 = arith.constant 0 : index
      %28 = vector.load %arg9[%c0_17, %c0_18, %c0_19] : memref<1x8x128xf32, #tpu.memory_space<vmem>>, vector<1x8x128xf32>
      tpu.vector_store %arg9[%c0_17, %c0_18, %c0_19], %27 {strides = array<i32>} : memref<1x8x128xf32, #tpu.memory_space<vmem>>, vector<1x8x128xf32>,
    } else {
    }
    %c1_i32_11 = arith.constant 1 : i32
    %19 = arith.cmpi eq, %arg0, %c1_i32_11 : i32
    %20 = arith.extui %19 : i1 to i32
    %c0_i32_12 = arith.constant 0 : i32
    %21 = arith.cmpi ne, %20, %c0_i32_12 : i32
    scf.if %21 {
      %c0_16 = arith.constant 0 : index
      %c0_17 = arith.constant 0 : index
      %27 = vector.load %arg10[%c0_16, %c0_17] : memref<2x64xf32, #tpu.memory_space<vmem>>, vector<1x64xf32>
      %cst_18 = arith.constant 3.125000e-02 : f32
      %28 = vector.broadcast %cst_18 : f32 to vector<1x64xf32>
      %29 = arith.mulf %27, %28 : vector<1x64xf32>
      %c1 = arith.constant 1 : index
      %c0_19 = arith.constant 0 : index
      %30 = vector.load %arg10[%c1, %c0_19] : memref<2x64xf32, #tpu.memory_space<vmem>>, vector<1x64xf32>
      %cst_20 = arith.constant 3.125000e-02 : f32
      %31 = vector.broadcast %cst_20 : f32 to vector<1x64xf32>
      %32 = arith.mulf %30, %31 : vector<1x64xf32>
      %33 = arith.mulf %29, %29 : vector<1x64xf32>
      %34 = arith.subf %32, %33 : vector<1x64xf32>
      %cst_21 = arith.constant 0.000000e+00 : f32
      %35 = vector.broadcast %cst_21 : f32 to vector<1x64xf32>
      %36 = arith.maximumf %34, %35 : vector<1x64xf32>
      %c0_22 = arith.constant 0 : index
      %c0_23 = arith.constant 0 : index
      %37 = vector.load %arg5[%c0_22, %c0_23] : memref<1x64xf32, #tpu.memory_space<vmem>>, vector<1x64xf32>
      %cst_24 = arith.constant 9.99999974E-6 : f32
      %38 = vector.broadcast %cst_24 : f32 to vector<1x64xf32>
      %39 = arith.addf %36, %38 : vector<1x64xf32>
      %40 = math.rsqrt %39 : vector<1x64xf32>
      %41 = arith.mulf %37, %40 : vector<1x64xf32>
      %c0_25 = arith.constant 0 : index
      %c0_26 = arith.constant 0 : index
      %42 = vector.load %arg6[%c0_25, %c0_26] : memref<1x64xf32, #tpu.memory_space<vmem>>, vector<1x64xf32>
      %43 = arith.mulf %29, %41 : vector<1x64xf32>
      %44 = arith.subf %42, %43 : vector<1x64xf32>
      %45 = vector.broadcast %41 : vector<1x64xf32> to vector<16x64xf32>
      %46 = arith.mulf %10, %45 : vector<16x64xf32>
      %47 = vector.broadcast %44 : vector<1x64xf32> to vector<16x64xf32>
      %48 = arith.addf %46, %47 : vector<16x64xf32>
      %cst_27 = arith.constant 0.000000e+00 : f32
      %49 = vector.broadcast %cst_27 : f32 to vector<16x64xf32>
      %50 = arith.cmpf oge, %48, %49 : vector<16x64xf32>
      %cst_28 = arith.constant 2.000000e-01 : f32
      %51 = vector.broadcast %cst_28 : f32 to vector<16x64xf32>
      %52 = arith.mulf %51, %48 : vector<16x64xf32>
      %53 = arith.select %50, %48, %52 : vector<16x64xi1>, vector<16x64xf32>
      %c0_29 = arith.constant 0 : index
      %c0_30 = arith.constant 0 : index
      %c0_31 = arith.constant 0 : index
      %54 = vector.load %arg9[%c0_29, %c0_30, %c0_31] : memref<1x8x128xf32, #tpu.memory_space<vmem>>, vector<1x8x128xf32>
      %c0_32 = arith.constant 0 : index
      %c0_33 = arith.constant 0 : index
      %55 = vector.load %arg7[%c0_32, %c0_33] : memref<16x64xf32, #tpu.memory_space<vmem>>, vector<16x64xf32>
      %56 = arith.mulf %53, %55 : vector<16x64xf32>
      %57 = vector.shape_cast %56 : vector<16x64xf32> to vector<1x16x64xf32>
      %cst_34 = arith.constant dense<0.000000e+00> : vector<1xf32>
      %58 = vector.multi_reduction <add>, %57, %cst_34 [1, 2] : vector<1x16x64xf32> to vector<1xf32>
      %59 = vector.shape_cast %58 : vector<1xf32> to vector<1x1x1xf32>
      %60 = vector.extract %59[0, 0, 0] : f32 from vector<1x1x1xf32>
      %61 = vector.broadcast %60 : f32 to vector<1x8x128xf32>
      %62 = arith.addf %54, %61 : vector<1x8x128xf32>
      %c0_35 = arith.constant 0 : index
      %c0_36 = arith.constant 0 : index
      %c0_37 = arith.constant 0 : index
      %63 = vector.load %arg9[%c0_35, %c0_36, %c0_37] : memref<1x8x128xf32, #tpu.memory_space<vmem>>, vector<1x8x128xf32>
      tpu.vector_store %arg9[%c0_35, %c0_36, %c0_37], %62 {strides = array<i32>} : memref<1x8x128xf32, #tpu.memory_space<vmem>>, vector<1x8x128xf32>,
    } else {
    }
    %c1_i32_13 = arith.constant 1 : i32
    %22 = arith.cmpi eq, %arg0, %c1_i32_13 : i32
    %c0_i32_14 = arith.constant 0 : i32
    %23 = arith.cmpi eq, %arg2, %c0_i32_14 : i32
    %24 = arith.andi %22, %23 : i1
    %25 = arith.extui %24 : i1 to i32
    %c0_i32_15 = arith.constant 0 : i32
    %26 = arith.cmpi ne, %25, %c0_i32_15 : i32
    scf.if %26 {
      %c0_16 = arith.constant 0 : index
      %c0_17 = arith.constant 0 : index
      %c0_18 = arith.constant 0 : index
      %27 = vector.load %arg9[%c0_16, %c0_17, %c0_18] : memref<1x8x128xf32, #tpu.memory_space<vmem>>, vector<1x8x128xf32>
      %c0_19 = arith.constant 0 : index
      %28 = memref.load %arg8[%c0_19] : memref<1xf32, #tpu.memory_space<smem>>
      %29 = vector.broadcast %28 : f32 to vector<1x8x128xf32>
      %30 = arith.addf %27, %29 : vector<1x8x128xf32>
      %cst_20 = arith.constant 0.000000e+00 : f32
      %31 = vector.broadcast %cst_20 : f32 to vector<1x8x128xf32>
      %32 = arith.subf %31, %30 : vector<1x8x128xf32>
      %33 = math.exp %32 : vector<1x8x128xf32>
      %cst_21 = arith.constant 1.000000e+00 : f32
      %34 = vector.broadcast %cst_21 : f32 to vector<1x8x128xf32>
      %35 = arith.addf %34, %33 : vector<1x8x128xf32>
      %cst_22 = arith.constant 1.000000e+00 : f32
      %36 = vector.broadcast %cst_22 : f32 to vector<1x8x128xf32>
      %37 = arith.divf %36, %35 : vector<1x8x128xf32>
      %c0_23 = arith.constant 0 : index
      %c0_24 = arith.constant 0 : index
      %c0_25 = arith.constant 0 : index
      %38 = vector.load %arg9[%c0_23, %c0_24, %c0_25] : memref<1x8x128xf32, #tpu.memory_space<vmem>>, vector<1x8x128xf32>
      tpu.vector_store %arg9[%c0_23, %c0_24, %c0_25], %37 {strides = array<i32>} : memref<1x8x128xf32, #tpu.memory_space<vmem>>, vector<1x8x128xf32>,
    } else {
    }
    return
  }
  func.func @transform_0(%arg0: i32, %arg1: i32, %arg2: i32) -> (i32, i32, i32) {
    %c0_i32 = arith.constant 0 : i32
    %c0_i32_0 = arith.constant 0 : i32
    return %arg1, %arg2, %c0_i32 : i32, i32, i32
  }
  func.func @transform_1(%arg0: i32, %arg1: i32, %arg2: i32) -> (i32, i32) {
    %c0_i32 = arith.constant 0 : i32
    %c0_i32_0 = arith.constant 0 : i32
    %c0_i32_1 = arith.constant 0 : i32
    return %c0_i32, %c0_i32_0 : i32, i32
  }
  func.func @transform_2(%arg0: i32, %arg1: i32, %arg2: i32) -> (i32, i32) {
    %c0_i32 = arith.constant 0 : i32
    %c0_i32_0 = arith.constant 0 : i32
    %c0_i32_1 = arith.constant 0 : i32
    return %c0_i32, %c0_i32_0 : i32, i32
  }
  func.func @transform_3(%arg0: i32, %arg1: i32, %arg2: i32) -> (i32, i32) {
    %c0_i32 = arith.constant 0 : i32
    %c0_i32_0 = arith.constant 0 : i32
    %c0_i32_1 = arith.constant 0 : i32
    return %c0_i32, %c0_i32_0 : i32, i32
  }
  func.func @transform_4(%arg0: i32, %arg1: i32, %arg2: i32) -> (i32, i32) {
    %c0_i32 = arith.constant 0 : i32
    %c0_i32_0 = arith.constant 0 : i32
    return %arg2, %c0_i32 : i32, i32
  }
  func.func @transform_5(%arg0: i32, %arg1: i32, %arg2: i32) -> i32 {
    %c0_i32 = arith.constant 0 : i32
    %c0_i32_0 = arith.constant 0 : i32
    return %c0_i32 : i32
  }
  func.func @transform_6(%arg0: i32, %arg1: i32, %arg2: i32) -> (i32, i32, i32) {
    %0 = arith.muli %arg0, %arg1 : i32
    %c0_i32 = arith.constant 0 : i32
    %c0_i32_0 = arith.constant 0 : i32
    %c0_i32_1 = arith.constant 0 : i32
    return %0, %c0_i32, %c0_i32_0 : i32, i32, i32
  }
}

</mosaic_0001>

<llo_original>
// kernel: discriminator_forward.2
$region0: #{discriminator_forward.2}
  #allocation0 [shape = 'u32[]', space=smem, size = 0x4, offset = 0x4, fixed_abs, tag = 'smem constant byte address 0x4 - core index']
  #allocation1 [shape = 'u32[144,128]{1,0:T(1,128)}', space=vmem, size = 0x12000, scoped, tag = 'internal scratch']
  #allocation2 [shape = 'f32[2,128]{1,0:T(2,128)}', space=vmem, size = 0x400, scoped, tag = 'scratch operand']
  %s0 = inlined_call_operand.vmem [shape: bf16[64,72], index: 0, kind: input, shape index: {}]
  %s1 = inlined_call_operand.vmem [shape: bf16[72,128], index: 1, kind: input, shape index: {}]
  %s2 = inlined_call_operand.vmem [shape: f32[1,128], index: 2, kind: input, shape index: {}]
  %s3 = inlined_call_operand.vmem [shape: f32[1,128], index: 3, kind: input, shape index: {}]
  %s4 = inlined_call_operand.vmem [shape: bf16[64,128], index: 4, kind: output, shape index: {}]
  %s5 = sld [smem:[#allocation0]]
  $region61: #{discriminator_forward.2} parent=0
    _
  %s7 = ssub.s32 1, %s5
  %s8 = scalar_select 0, %s7, %s5
  loop: start=0, step=1, limit=4
  $region2: #{discriminator_forward.2} parent=0 // loop_pre_header
    _
  $region3: #{discriminator_forward.2} parent=0 // loop_header
    %s10 = sphi 0, %s14
    %p11 = scmp.ge.s32.totalorder %s10, 4
    %s17 = sphi 0, %s29
    %s18 = sphi 0, %s25
    %s19 = sphi 0, %s17
    %s20 = sphi 0, %s18
    %s21 = sphi 0, %s19
    %s22 = sphi 0, %s20
    %s32 = sphi 0, %s34
    %s35 = sphi 0, %s32
    %s36 = sphi 0, %s35
    %s52 = sphi 0, %s36
    %s56 = sphi 0, %s56
    %s58 = sphi 0, %s56
    %s59 = sphi 0, %s58
    %s73 = sphi 0, %s59
    %s77 = sphi 0, %s77
    %s79 = sphi 0, %s77
    %s80 = sphi 0, %s79
    %s94 = sphi 0, %s80
    %s98 = sphi 0, %s98
    %s100 = sphi 0, %s98
    %s101 = sphi 0, %s100
    %s115 = sphi 0, %s101
    %s123 = sphi 0, %s125
    %s126 = sphi 0, %s123
    %s127 = sphi 0, %s126
    %s143 = sphi 0, %s127
  $region4: #{discriminator_forward.2} parent=0 // loop_header_branch
    %13 = sbr.rel (%p11) target = $region8
  $region5: #{discriminator_forward.2} parent=0 // loop_body
    %s15 = ssub.s32 %s10, 1
    %s16 = ssub.s32 %s10, 2
    %s23 = sadd.s32 1, %s18
    %p24 = scmp.ge.s32.totalorder %s23, 1
    %s25 = scalar_select %p24, 0, %s23
    %s26 = sadd.s32 1, %s17
    %s27 = scalar_select %p24, %s26, %s17
    %p28 = scmp.ge.s32.totalorder %s27, 2
    %s29 = scalar_select %p28, 0, %s27
    %s30 = ssub.s32 %s18, %s25
    %p31 = scmp.eq.s32.totalorder %s30, 0
    %s33 = sadd.s32 %s32, 1
    %s34 = scalar_select %p31, %s32, %s33
    %p37 = pneg %p31
    %p38 = scmp.eq.s32.totalorder %s10, 1
    %p39 = por %p37, %p38
    %p40 = scmp.ne.s32.totalorder %s32, %s35
    %p41 = scmp.eq.s32.totalorder %s10, 0
    %p42 = por %p40, %p41
    %p43 = scmp.ne.s32.totalorder %s32, %s35
    %p44 = scmp.eq.s32.totalorder %s15, 1
    %p45 = por %p43, %p44
    %p46 = scmp.ne.s32.totalorder %s35, %s36
    %p47 = scmp.eq.s32.totalorder %s15, 0
    %p48 = por %p46, %p47
    %p49 = scmp.ne.s32.totalorder %s35, %s36
    %p50 = scmp.eq.s32.totalorder %s16, 1
    %p51 = por %p49, %p50
    %p53 = scmp.ne.s32.totalorder %s36, %s52
    %p54 = scmp.eq.s32.totalorder %s16, 0
    %p55 = por %p53, %p54
    %s57 = sadd.s32 %s56, 1
    %p60 = scmp.eq.s32.totalorder %s10, 1
    %p61 = scmp.ne.s32.totalorder %s56, %s58
    %p62 = scmp.eq.s32.totalorder %s10, 0
    %p63 = por %p61, %p62
    %p64 = scmp.ne.s32.totalorder %s56, %s58
    %p65 = scmp.eq.s32.totalorder %s15, 1
    %p66 = por %p64, %p65
    %p67 = scmp.ne.s32.totalorder %s58, %s59
    %p68 = scmp.eq.s32.totalorder %s15, 0
    %p69 = por %p67, %p68
    %p70 = scmp.ne.s32.totalorder %s58, %s59
    %p71 = scmp.eq.s32.totalorder %s16, 1
    %p72 = por %p70, %p71
    %p74 = scmp.ne.s32.totalorder %s59, %s73
    %p75 = scmp.eq.s32.totalorder %s16, 0
    %p76 = por %p74, %p75
    %s78 = sadd.s32 %s77, 1
    %p81 = scmp.eq.s32.totalorder %s10, 1
    %p82 = scmp.ne.s32.totalorder %s77, %s79
    %p83 = scmp.eq.s32.totalorder %s10, 0
    %p84 = por %p82, %p83
    %p85 = scmp.ne.s32.totalorder %s77, %s79
    %p86 = scmp.eq.s32.totalorder %s15, 1
    %p87 = por %p85, %p86
    %p88 = scmp.ne.s32.totalorder %s79, %s80
    %p89 = scmp.eq.s32.totalorder %s15, 0
    %p90 = por %p88, %p89
    %p91 = scmp.ne.s32.totalorder %s79, %s80
    %p92 = scmp.eq.s32.totalorder %s16, 1
    %p93 = por %p91, %p92
    %p95 = scmp.ne.s32.totalorder %s80, %s94
    %p96 = scmp.eq.s32.totalorder %s16, 0
    %p97 = por %p95, %p96
    %s99 = sadd.s32 %s98, 1
    %p102 = scmp.eq.s32.totalorder %s10, 1
    %p103 = scmp.ne.s32.totalorder %s98, %s100
    %p104 = scmp.eq.s32.totalorder %s10, 0
    %p105 = por %p103, %p104
    %p106 = scmp.ne.s32.totalorder %s98, %s100
    %p107 = scmp.eq.s32.totalorder %s15, 1
    %p108 = por %p106, %p107
    %p109 = scmp.ne.s32.totalorder %s100, %s101
    %p110 = scmp.eq.s32.totalorder %s15, 0
    %p111 = por %p109, %p110
    %p112 = scmp.ne.s32.totalorder %s100, %s101
    %p113 = scmp.eq.s32.totalorder %s16, 1
    %p114 = por %p112, %p113
    %p116 = scmp.ne.s32.totalorder %s101, %s115
    %p117 = scmp.eq.s32.totalorder %s16, 0
    %p118 = por %p116, %p117
    %s119 = smul.u32 %s18, %s17
    %s120 = smul.u32 %s25, %s29
    %s121 = ssub.s32 %s119, %s120
    %p122 = scmp.eq.s32.totalorder %s121, 0
    %s124 = sadd.s32 %s123, 1
    %s125 = scalar_select %p122, %s123, %s124
    %p128 = pneg %p122
    %p129 = scmp.eq.s32.totalorder %s10, 1
    %p130 = por %p128, %p129
    %p131 = scmp.ne.s32.totalorder %s123, %s126
    %p132 = scmp.eq.s32.totalorder %s10, 0
    %p133 = por %p131, %p132
    %p134 = scmp.ne.s32.totalorder %s123, %s126
    %p135 = scmp.eq.s32.totalorder %s15, 1
    %p136 = por %p134, %p135
    %p137 = scmp.ne.s32.totalorder %s126, %s127
    %p138 = scmp.eq.s32.totalorder %s15, 0
    %p139 = por %p137, %p138
    %p140 = scmp.ne.s32.totalorder %s126, %s127
    %p141 = scmp.eq.s32.totalorder %s16, 1
    %p142 = por %p140, %p141
    %p144 = scmp.ne.s32.totalorder %s127, %s143
    %p145 = scmp.eq.s32.totalorder %s16, 0
    %p146 = por %p144, %p145
    %p147 = scmp.le.s32.totalorder 1, %s10
    %p148 = scmp.lt.s32.totalorder %s10, 3
    %p149 = pnand %p147, %p148
    %p150 = pneg %p149
    // Predicated region
    $region9: #{discriminator_forward.2} parent=5 // pred_check
      _
    $region10: #{discriminator_forward.2} parent=5 // pred_check_branch
      %152 = sbr.rel (%p149) target = $region12
    $region11: #{discriminator_forward.2} parent=5 // pred_region
      %s153 = ssub.s32 %s10, 1
      // Predicated region
      $region13: #{discriminator_forward.2} parent=11 // pred_check
        %p154 = pneg %p48
      $region14: #{discriminator_forward.2} parent=11 // pred_check_branch
        %156 = sbr.rel (%p154) target = $region16
      $region15: #{discriminator_forward.2} parent=11 // pred_region
        %s157 = smul.u32 8, %s20
        %p158 = scmp.lt.s32.totalorder %s157, 7
        %s159 = scalar_select %p158, %s157, 7
        %s160 = smul.addr %s159, 4
        %s161 = scalar_lea.vmem %s0, %s160
        %s162 = smul.u32 8, %s20
      $region16: #{discriminator_forward.2} parent=11 // pred_fallthru
        _
      // Predicated region
      $region17: #{discriminator_forward.2} parent=11 // pred_check
        %p163 = pneg %p69
      $region18: #{discriminator_forward.2} parent=11 // pred_check_branch
        %165 = sbr.rel (%p163) target = $region20
      $region19: #{discriminator_forward.2} parent=11 // pred_region
        _
      $region20: #{discriminator_forward.2} parent=11 // pred_fallthru
        _
      // Predicated region
      $region21: #{discriminator_forward.2} parent=11 // pred_check
        %p166 = pneg %p90
      $region22: #{discriminator_forward.2} parent=11 // pred_check_branch
        %168 = sbr.rel (%p166) target = $region24
      $region23: #{discriminator_forward.2} parent=11 // pred_region
        _
      $region24: #{discriminator_forward.2} parent=11 // pred_fallthru
        _
      // Predicated region
      $region25: #{discriminator_forward.2} parent=11 // pred_check
        %p169 = pneg %p111
      $region26: #{discriminator_forward.2} parent=11 // pred_check_branch
        %171 = sbr.rel (%p169) target = $region28
      $region27: #{discriminator_forward.2} parent=11 // pred_region
        _
      $region28: #{discriminator_forward.2} parent=11 // pred_fallthru
        _
    $region12: #{discriminator_forward.2} parent=5 // pred_fallthru
      _
    %p172 = scmp.lt.s32.totalorder %s10, 2
    // Predicated region
    $region29: #{discriminator_forward.2} parent=5 // pred_check
      %p173 = pneg %p172
    $region30: #{discriminator_forward.2} parent=5 // pred_check_branch
      %175 = sbr.rel (%p173) target = $region32
    $region31: #{discriminator_forward.2} parent=5 // pred_region
      _
    $region32: #{discriminator_forward.2} parent=5 // pred_fallthru
      _
    %p176 = scmp.le.s32.totalorder 1, %s10
    %p177 = scmp.lt.s32.totalorder %s10, 3
    %p178 = pnand %p176, %p177
    %p179 = pneg %p178
    // Predicated region
    $region33: #{discriminator_forward.2} parent=5 // pred_check
      _
    $region34: #{discriminator_forward.2} parent=5 // pred_check_branch
      %181 = sbr.rel (%p178) target = $region36
    $region35: #{discriminator_forward.2} parent=5 // pred_region
      %s182 = ssub.s32 %s10, 1
      %s183 = smul.u32 8, %s20
      %p184 = scmp.lt.s32.totalorder %s183, 7
      %s185 = scalar_select %p184, %s183, 7
      %s186 = smul.addr %s185, 4
      %s187 = scalar_lea.vmem %s0, %s186
      %p188 = pneg %p48
      %p189 = pneg %p45
      %p190 = pneg %p69
      %p191 = pneg %p66
      %p192 = pneg %p90
      %p193 = pneg %p87
      %p194 = pneg %p111
      %p195 = pneg %p108
      %p196 = pneg %p139
      %p197 = pneg %p136
      %s198 = smul.u32 %s20, %s19
      %s199 = smul.u32 8, %s198
      %p200 = scmp.lt.s32.totalorder %s199, 7
      %s201 = scalar_select %p200, %s199, 7
      %s202 = smul.addr %s201, 4
      %s203 = scalar_lea.vmem %s4, %s202
      %s204 = smul.u32 8, %s20
      %p205 = scmp.lt.s32.totalorder %s204, 7
      %s206 = scalar_select %p205, %s204, 7
      %s207 = smul.addr %s206, 4
      %s208 = scalar_lea.vmem %s0, %s207
      %s209 = smul.u32 8, %s20
      %s210 = smul.u32 %s20, %s19
      %s211 = smul.u32 8, %s210
      %p212 = scmp.lt.s32.totalorder %s211, 7
      %s213 = scalar_select %p212, %s211, 7
      %s214 = smul.addr %s213, 4
      %s215 = scalar_lea.vmem %s4, %s214
      %s216 = smul.u32 %s20, %s19
      %s217 = smul.u32 8, %s216
      %p219 = scmp.eq.s32.totalorder %s19, 0
      %p220 = scmp.eq.s32.totalorder %s20, 0
      %p221 = pnand %p219, %p220
      %p222 = pneg %p221
      // Predicated region
      $region37: #{discriminator_forward.2} parent=35 // pred_check
        _
      $region38: #{discriminator_forward.2} parent=35 // pred_check_branch
        %224 = sbr.rel (%p221) target = $region40
      $region39: #{discriminator_forward.2} parent=35 // pred_region
        %225 = vst [vmem:[#allocation2] sm:$0x3] 0.0
      $region40: #{discriminator_forward.2} parent=35 // pred_fallthru
        _
      %v226 = vld [vmem:[%s208] sm:$0xf]
      %v227 = vld [vmem:[%s208 + $0x4] sm:$0xf]
      %v228 = vld [vmem:[%s208 + $0x8] sm:$0xf]
      %v229 = vld [vmem:[%s208 + $0xc] sm:$0xf]
      %v230 = vld [vmem:[%s208 + $0x10] sm:$0xf]
      %v231 = vld [vmem:[%s208 + $0x14] sm:$0xf]
      %v232 = vld [vmem:[%s208 + $0x18] sm:$0xf]
      %v233 = vld [vmem:[%s208 + $0x1c] sm:$0xf]
      %v234 = vld [vmem:[%s1] sm:$0xf]
      %v235 = vld [vmem:[%s1 + $0x4] sm:$0xf]
      %v236 = vld [vmem:[%s1 + $0x8] sm:$0xf]
      %v237 = vld [vmem:[%s1 + $0xc] sm:$0xf]
      %v238 = vld [vmem:[%s1 + $0x10] sm:$0xf]
      %v239 = vld [vmem:[%s1 + $0x14] sm:$0xf]
      %v240 = vld [vmem:[%s1 + $0x18] sm:$0xf]
      %v241 = vld [vmem:[%s1 + $0x1c] sm:$0xf]
      %v242 = vld [vmem:[%s1 + $0x20] sm:$0xf]
      %v251 = vunpack.c.l.b16 %v226
      %v252 = vunpack.c.l.b16 %v227
      %v253 = vunpack.c.l.b16 %v228
      %v254 = vunpack.c.l.b16 %v229
      %v255 = vunpack.c.l.b16 %v230
      %v256 = vunpack.c.l.b16 %v231
      %v257 = vunpack.c.l.b16 %v232
      %v258 = vunpack.c.l.b16 %v233
      %v259 = vpack.c.b16 %v252, %v251
      %v260 = vpack.c.b16 %v254, %v253
      %v261 = vpack.c.b16 %v256, %v255
      %v262 = vpack.c.b16 %v258, %v257
      %v272 = vunpack.c.l.b16 %v234
      %v273 = vunpack.c.l.b16 %v235
      %v274 = vunpack.c.l.b16 %v236
      %v275 = vunpack.c.l.b16 %v237
      %v276 = vunpack.c.l.b16 %v238
      %v277 = vunpack.c.l.b16 %v239
      %v278 = vunpack.c.l.b16 %v240
      %v279 = vunpack.c.l.b16 %v241
      %v280 = vunpack.c.l.b16 %v242
      %v281 = vpack.c.b16 %v273, %v272
      %v282 = vpack.c.b16 %v275, %v274
      %v283 = vpack.c.b16 %v277, %v276
      %v284 = vpack.c.b16 %v279, %v278
      %v285 = vpack.c.b16 %v280, %v280
      %vm290 = vcmask 588800
      %v292 = vsel %vm290, %v259, 0
      %v295 = vsel %vm290, %v260, 0
      %v298 = vsel %vm290, %v261, 0
      %v301 = vsel %vm290, %v262, 0
      %vm303 = vcmask 1043456
      %v305 = vsel %vm303, %v285, 0
      %307 = vmatprep.subr.bf16.mxu0 0
      %308 = vmatpush1.bf16.msra.mxu0 %v281
      %309 = vmatprep.subr.bf16.mxu0 0
      %310 = vmatpush1.bf16.msra.mxu0 %v282
      %311 = vmatprep.subr.bf16.mxu0 0
      %312 = vmatpush1.bf16.msra.mxu0 %v283
      %313 = vmatprep.subr.bf16.mxu0 0
      %314 = vmatpush1.bf16.msra.mxu0 %v284
      %315 = vmatprep.subr.bf16.mxu0 0
      %316 = vmatpush1.bf16.msra.mxu0 %v305
      %317 = vmatprep.subr.bf16.mxu0 0
      %318 = vmatpush1.bf16.msra.mxu0 0
      %319 = vmatprep.subr.bf16.mxu0 0
      %320 = vmatpush1.bf16.msra.mxu0 0
      %321 = vmatprep.subr.bf16.mxu0 0
      %322 = vmatpush1.bf16.msra.mxu0 0
      %323 = vmatprep.subr.bf16.mxu0 0
      %324 = vmatpush1.bf16.msra.mxu0 0
      %325 = vmatprep.subr.bf16.mxu0 0
      %326 = vmatpush1.bf16.msra.mxu0 0
      %327 = vmatprep.subr.bf16.mxu0 0
      %328 = vmatpush1.bf16.msra.mxu0 0
      %329 = vmatprep.subr.bf16.mxu0 0
      %330 = vmatpush1.bf16.msra.mxu0 0
      %331 = vmatprep.subr.bf16.mxu0 0
      %332 = vmatpush1.bf16.msra.mxu0 0
      %333 = vmatprep.subr.bf16.mxu0 0
      %334 = vmatpush1.bf16.msra.mxu0 0
      %335 = vmatprep.subr.bf16.mxu0 0
      %336 = vmatpush1.bf16.msra.mxu0 0
      %337 = vmatprep.subr.bf16.mxu0 0
      %338 = vmatpush1.bf16.msra.mxu0 0
      %339 = vmatprep.mubr.bf16.mxu0 0
      %340 = vmatmul.mubr.bf16.gmra.mrb[0].mxu0 %v292
      %v341 = vpop.f32.mrb[0].mxu0
      %v342 = vadd.f32 0.0, %v341
      %v343 = vpop.f32.mrb[0].mxu0
      %v344 = vpop.f32.mrb[0].mxu0
      %v345 = vadd.f32 0.0, %v344
      %v346 = vpop.f32.mrb[0].mxu0
      %347 = vmatprep.mubr.bf16.mxu0 0
      %348 = vmatmul.mubr.bf16.gmra.mrb[0].mxu0 %v295
      %v349 = vpop.f32.mrb[0].mxu0
      %v350 = vadd.f32 0.0, %v349
      %v351 = vpop.f32.mrb[0].mxu0
      %v352 = vpop.f32.mrb[0].mxu0
      %v353 = vadd.f32 0.0, %v352
      %v354 = vpop.f32.mrb[0].mxu0
      %355 = vmatprep.mubr.bf16.mxu0 0
      %356 = vmatmul.mubr.bf16.gmra.mrb[0].mxu0 %v298
      %v357 = vpop.f32.mrb[0].mxu0
      %v358 = vadd.f32 0.0, %v357
      %v359 = vpop.f32.mrb[0].mxu0
      %v360 = vpop.f32.mrb[0].mxu0
      %v361 = vadd.f32 0.0, %v360
      %v362 = vpop.f32.mrb[0].mxu0
      %363 = vmatprep.mubr.bf16.mxu0 0
      %364 = vmatmul.mubr.bf16.gmra.mrb[0].mxu0 %v301
      %v365 = vpop.f32.mrb[0].mxu0
      %v366 = vadd.f32 0.0, %v365
      %v367 = vpop.f32.mrb[0].mxu0
      %v368 = vpop.f32.mrb[0].mxu0
      %v369 = vadd.f32 0.0, %v368
      %v370 = vpop.f32.mrb[0].mxu0
      %371 = vdwg.mxu0
      // Predicated region
      $region41: #{discriminator_forward.2} parent=35 // pred_check
        %p372 = pneg %p219
      $region42: #{discriminator_forward.2} parent=35 // pred_check_branch
        %374 = sbr.rel (%p372) target = $region44
      $region43: #{discriminator_forward.2} parent=35 // pred_region
        %v375 = vld [vmem:[#allocation2] sm:$0x1]
        %v376 = vadd.f32 %v342, %v345
        %v377 = vadd.f32 %v376, %v350
        %v378 = vadd.f32 %v377, %v353
        %v379 = vadd.f32 %v378, %v358
        %v380 = vadd.f32 %v379, %v361
        %v381 = vadd.f32 %v380, %v366
        %v382 = vadd.f32 %v381, %v369
        %v383 = vrot.slane %v382, 4
        %v384 = vadd.f32 %v382, %v383
        %v385 = vrot.slane %v384, 2
        %v386 = vadd.f32 %v384, %v385
        %v387 = vrot.slane %v386, 1
        %v388 = vadd.f32 %v386, %v387
        %v389 = vadd.f32 %v375, %v388
        %390 = vst [vmem:[#allocation2] sm:$0x1] %v389
        %v391 = vld [vmem:[#allocation2 + $0x1] sm:$0x1]
        %v392 = vmul.f32 %v342, %v342
        %v393 = vmul.f32 %v345, %v345
        %v394 = vmul.f32 %v350, %v350
        %v395 = vmul.f32 %v353, %v353
        %v396 = vmul.f32 %v358, %v358
        %v397 = vmul.f32 %v361, %v361
        %v398 = vmul.f32 %v366, %v366
        %v399 = vmul.f32 %v369, %v369
        %v400 = vadd.f32 %v392, %v393
        %v401 = vadd.f32 %v400, %v394
        %v402 = vadd.f32 %v401, %v395
        %v403 = vadd.f32 %v402, %v396
        %v404 = vadd.f32 %v403, %v397
        %v405 = vadd.f32 %v404, %v398
        %v406 = vadd.f32 %v405, %v399
        %v407 = vrot.slane %v406, 4
        %v408 = vadd.f32 %v406, %v407
        %v409 = vrot.slane %v408, 2
        %v410 = vadd.f32 %v408, %v409
        %v411 = vrot.slane %v410, 1
        %v412 = vadd.f32 %v410, %v411
        %v413 = vadd.f32 %v391, %v412
        %414 = vst [vmem:[#allocation2 + $0x1] sm:$0x1] %v413
      $region44: #{discriminator_forward.2} parent=35 // pred_fallthru
        _
      %p415 = scmp.eq.s32.totalorder %s19, 1
      // Predicated region
      $region45: #{discriminator_forward.2} parent=35 // pred_check
        %p416 = pneg %p415
      $region46: #{discriminator_forward.2} parent=35 // pred_check_branch
        %418 = sbr.rel (%p416) target = $region48
      $region47: #{discriminator_forward.2} parent=35 // pred_region
        %v419 = vld [vmem:[#allocation2] sm:$0x3]
        %420 = vrot.lane.b32.xlu0 %v419, 64
        %v421 = vpop.permute.xlu0 %420
        %v422 = vadd.f32 %v419, %v421
        %v423 = vmul.f32 %v422, 0.0078125
        %v424 = vmul.f32 %v423, %v423
        %v426 = vrot.slane %v424, 7
        %v428 = vsub.f32 %v423, %v426
        %v429 = vmax.f32 %v428, 0.0
        %v430 = vld [vmem:[%s2] sm:$0x1]
        %v431 = vadd.f32 %v429, 1e-05
        %v432 = vrsqrt.pop %v431
        %v435 = vunpack.c.l.s4 1966171168
        %v436 = vunpack.c.0.s8 %v435
        %v437 = vlaneseq
        %v438 = vshrl.u32 %v437, 7
        %v439 = vsub.s32 %v436, %v438
        %v440 = vrot.slane %v432, %v439
        %v441 = vcombine.high %v440, %v440
        %v443 = vunpack.c.l.s4 1966171168
        %v444 = vunpack.c.0.s8 %v443
        %v445 = vlaneseq
        %v446 = vshrl.u32 %v445, 7
        %v447 = vsub.s32 %v444, %v446
        %v448 = vrot.slane %v441, %v447
        %v450 = vmul.f32 %v430, %v448
        %v451 = vld [vmem:[%s3] sm:$0x1]
        %v452 = vmul.f32 %v423, %v450
        %v453 = vsub.f32 %v451, %v452
        %v455 = vlaneseq
        %v456 = vshrl.u32 %v455, 7
        %v457 = vsub.s32 0, %v456
        %v458 = vrot.slane %v450, %v457
        %v460 = vmul.f32 %v342, %v458
        %v461 = vmul.f32 %v345, %v458
        %v462 = vmul.f32 %v350, %v458
        %v463 = vmul.f32 %v353, %v458
        %v464 = vmul.f32 %v358, %v458
        %v465 = vmul.f32 %v361, %v458
        %v466 = vmul.f32 %v366, %v458
        %v467 = vmul.f32 %v369, %v458
        %v469 = vlaneseq
        %v470 = vshrl.u32 %v469, 7
        %v471 = vsub.s32 0, %v470
        %v472 = vrot.slane %v453, %v471
        %v474 = vadd.f32 %v460, %v472
        %v475 = vadd.f32 %v461, %v472
        %v476 = vadd.f32 %v462, %v472
        %v477 = vadd.f32 %v463, %v472
        %v478 = vadd.f32 %v464, %v472
        %v479 = vadd.f32 %v465, %v472
        %v480 = vadd.f32 %v466, %v472
        %v481 = vadd.f32 %v467, %v472
        %vm482 = vcmp.ge.f32.partialorder %v474, 0.0
        %vm483 = vcmp.ge.f32.partialorder %v475, 0.0
        %vm484 = vcmp.ge.f32.partialorder %v476, 0.0
        %vm485 = vcmp.ge.f32.partialorder %v477, 0.0
        %vm486 = vcmp.ge.f32.partialorder %v478, 0.0
        %vm487 = vcmp.ge.f32.partialorder %v479, 0.0
        %vm488 = vcmp.ge.f32.partialorder %v480, 0.0
        %vm489 = vcmp.ge.f32.partialorder %v481, 0.0
        %v490 = vmul.f32 %v474, 0.2
        %v491 = vmul.f32 %v475, 0.2
        %v492 = vmul.f32 %v476, 0.2
        %v493 = vmul.f32 %v477, 0.2
        %v494 = vmul.f32 %v478, 0.2
        %v495 = vmul.f32 %v479, 0.2
        %v496 = vmul.f32 %v480, 0.2
        %v497 = vmul.f32 %v481, 0.2
        %v498 = vsel %vm482, %v474, %v490
        %v499 = vsel %vm483, %v475, %v491
        %v500 = vsel %vm484, %v476, %v492
        %v501 = vsel %vm485, %v477, %v493
        %v502 = vsel %vm486, %v478, %v494
        %v503 = vsel %vm487, %v479, %v495
        %v504 = vsel %vm488, %v480, %v496
        %v505 = vsel %vm489, %v481, %v497
        %v506 = vpack.c.bf16 %v499, %v498
        %v507 = vpack.c.bf16 %v501, %v500
        %v508 = vpack.c.bf16 %v503, %v502
        %v509 = vpack.c.bf16 %v505, %v504
        %v514 = vunpack.c.l.b16 %v506
        %v515 = vunpack.c.h.b16 %v506
        %v516 = vunpack.c.l.b16 %v507
        %v517 = vunpack.c.h.b16 %v507
        %v518 = vunpack.c.l.b16 %v508
        %v519 = vunpack.c.h.b16 %v508
        %v520 = vunpack.c.l.b16 %v509
        %v521 = vunpack.c.h.b16 %v509
        %v522 = vpack.c.b16 %v514, %v514
        %v523 = vpack.c.b16 %v515, %v515
        %v524 = vpack.c.b16 %v516, %v516
        %v525 = vpack.c.b16 %v517, %v517
        %v526 = vpack.c.b16 %v518, %v518
        %v527 = vpack.c.b16 %v519, %v519
        %v528 = vpack.c.b16 %v520, %v520
        %v529 = vpack.c.b16 %v521, %v521
        %538 = vst [vmem:[%s215] sm:$0xf] %v522
        %539 = vst [vmem:[%s215 + $0x4] sm:$0xf] %v523
        %540 = vst [vmem:[%s215 + $0x8] sm:$0xf] %v524
        %541 = vst [vmem:[%s215 + $0xc] sm:$0xf] %v525
        %542 = vst [vmem:[%s215 + $0x10] sm:$0xf] %v526
        %543 = vst [vmem:[%s215 + $0x14] sm:$0xf] %v527
        %544 = vst [vmem:[%s215 + $0x18] sm:$0xf] %v528
        %545 = vst [vmem:[%s215 + $0x1c] sm:$0xf] %v529
      $region48: #{discriminator_forward.2} parent=35 // pred_fallthru
        _
      %s546 = smul.u32 %s20, %s19
      %s547 = smul.u32 8, %s546
      %p548 = scmp.lt.s32.totalorder %s547, 7
      %s549 = scalar_select %p548, %s547, 7
      %s550 = smul.addr %s549, 4
      %s551 = scalar_lea.vmem %s4, %s550
      // Predicated region
      $region49: #{discriminator_forward.2} parent=35 // pred_check
        %p552 = pneg %p136
      $region50: #{discriminator_forward.2} parent=35 // pred_check_branch
        %554 = sbr.rel (%p552) target = $region52
      $region51: #{discriminator_forward.2} parent=35 // pred_region
        %s555 = smul.u32 %s20, %s19
        %s556 = smul.u32 8, %s555
      $region52: #{discriminator_forward.2} parent=35 // pred_fallthru
        _
    $region36: #{discriminator_forward.2} parent=5 // pred_fallthru
      _
    %p557 = scmp.le.s32.totalorder 2, %s10
    // Predicated region
    $region53: #{discriminator_forward.2} parent=5 // pred_check
      %p558 = pneg %p557
    $region54: #{discriminator_forward.2} parent=5 // pred_check_branch
      %560 = sbr.rel (%p558) target = $region56
    $region55: #{discriminator_forward.2} parent=5 // pred_region
      %s561 = ssub.s32 %s10, 2
      // Predicated region
      $region57: #{discriminator_forward.2} parent=55 // pred_check
        %p562 = pneg %p142
      $region58: #{discriminator_forward.2} parent=55 // pred_check_branch
        %564 = sbr.rel (%p562) target = $region60
      $region59: #{discriminator_forward.2} parent=55 // pred_region
        %s565 = smul.u32 %s22, %s21
        %s566 = smul.u32 8, %s565
        %p567 = scmp.lt.s32.totalorder %s566, 7
        %s568 = scalar_select %p567, %s566, 7
        %s569 = smul.addr %s568, 4
        %s570 = scalar_lea.vmem %s4, %s569
      $region60: #{discriminator_forward.2} parent=55 // pred_fallthru
        _
    $region56: #{discriminator_forward.2} parent=5 // pred_fallthru
      _
  $region6: #{discriminator_forward.2} parent=0 // loop_footer
    %s14 = sadd.s32 1, %s10
  $region7: #{discriminator_forward.2} parent=0 // loop_footer_branch
    %9 = sbr.rel target = $region3
  $region8: #{discriminator_forward.2} parent=0 // loop_exit
    _

// kernel: discriminator_forward.3
$region0: #{discriminator_forward.3}
  #allocation0 [shape = 'u32[]', space=smem, size = 0x4, offset = 0x4, fixed_abs, tag = 'smem constant byte address 0x4 - core index']
  #allocation1 [shape = 'u32[144,128]{1,0:T(1,128)}', space=vmem, size = 0x12000, scoped, tag = 'internal scratch']
  #allocation2 [shape = 'f32[2,64]{1,0:T(2,128)}', space=vmem, size = 0x400, scoped, tag = 'scratch operand']
  #allocation3 [shape = 'f32[1]{0:T(128)S(6)}', space=smem, size = 0x200, scoped, tag = 'scoped memory for discriminator_forward.3']
  %s0 = inlined_call_operand.vmem [shape: bf16[2,16,576], index: 0, kind: input, shape index: {}]
  %s1 = inlined_call_operand.vmem [shape: bf16[576,64], index: 1, kind: input, shape index: {}]
  %s2 = inlined_call_operand.vmem [shape: f32[1,64], index: 2, kind: input, shape index: {}]
  %s3 = inlined_call_operand.vmem [shape: f32[1,64], index: 3, kind: input, shape index: {}]
  %s4 = inlined_call_operand.vmem [shape: f32[16,64], index: 4, kind: input, shape index: {}]
  %s5 = inlined_call_operand.<no memory space> [shape: f32[1], index: 5, kind: input, shape index: {}]
  %s6 = inlined_call_operand.vmem [shape: f32[2,8,128], index: 6, kind: output, shape index: {}]
  %s7 = sld [smem:[#allocation0]]
  $region77: #{discriminator_forward.3} parent=0
    _
  %s9 = ssub.s32 1, %s7
  %s10 = scalar_select 0, %s9, %s7
  %11 = sst [smem:[#allocation3]] %s5
  loop: start=0, step=1, limit=6
  $region2: #{discriminator_forward.3} parent=0 // loop_pre_header
    _
  $region3: #{discriminator_forward.3} parent=0 // loop_header
    %s13 = sphi 0, %s17
    %p14 = scmp.ge.s32.totalorder %s13, 6
    %s20 = sphi 0, %s39
    %s21 = sphi 0, %s35
    %s22 = sphi 0, %s31
    %s23 = sphi 0, %s20
    %s24 = sphi 0, %s21
    %s25 = sphi 0, %s22
    %s26 = sphi 0, %s23
    %s27 = sphi 0, %s24
    %s28 = sphi 0, %s25
    %s44 = sphi 0, %s46
    %s47 = sphi 0, %s44
    %s48 = sphi 0, %s47
    %s64 = sphi 0, %s48
    %s68 = sphi 0, %s68
    %s70 = sphi 0, %s68
    %s71 = sphi 0, %s70
    %s85 = sphi 0, %s71
    %s89 = sphi 0, %s89
    %s91 = sphi 0, %s89
    %s92 = sphi 0, %s91
    %s106 = sphi 0, %s92
    %s110 = sphi 0, %s110
    %s112 = sphi 0, %s110
    %s113 = sphi 0, %s112
    %s127 = sphi 0, %s113
    %s133 = sphi 0, %s135
    %s136 = sphi 0, %s133
    %s137 = sphi 0, %s136
    %s153 = sphi 0, %s137
    %s157 = sphi 0, %s157
    %s159 = sphi 0, %s157
    %s160 = sphi 0, %s159
    %s174 = sphi 0, %s160
    %s182 = sphi 0, %s184
    %s185 = sphi 0, %s182
    %s186 = sphi 0, %s185
    %s202 = sphi 0, %s186
  $region4: #{discriminator_forward.3} parent=0 // loop_header_branch
    %16 = sbr.rel (%p14) target = $region8
  $region5: #{discriminator_forward.3} parent=0 // loop_body
    %s18 = ssub.s32 %s13, 1
    %s19 = ssub.s32 %s13, 2
    %s29 = sadd.s32 1, %s22
    %p30 = scmp.ge.s32.totalorder %s29, 1
    %s31 = scalar_select %p30, 0, %s29
    %s32 = sadd.s32 1, %s21
    %s33 = scalar_select %p30, %s32, %s21
    %p34 = scmp.ge.s32.totalorder %s33, 2
    %s35 = scalar_select %p34, 0, %s33
    %s36 = sadd.s32 1, %s20
    %s37 = scalar_select %p34, %s36, %s20
    %p38 = scmp.ge.s32.totalorder %s37, 2
    %s39 = scalar_select %p38, 0, %s37
    %s40 = ssub.s32 %s21, %s35
    %s41 = ssub.s32 %s22, %s31
    %s42 = sor.u32 %s40, %s41
    %p43 = scmp.eq.s32.totalorder %s42, 0
    %s45 = sadd.s32 %s44, 1
    %s46 = scalar_select %p43, %s44, %s45
    %p49 = pneg %p43
    %p50 = scmp.eq.s32.totalorder %s13, 3
    %p51 = por %p49, %p50
    %p52 = scmp.ne.s32.totalorder %s44, %s47
    %p53 = scmp.eq.s32.totalorder %s13, 0
    %p54 = por %p52, %p53
    %p55 = scmp.ne.s32.totalorder %s44, %s47
    %p56 = scmp.eq.s32.totalorder %s18, 3
    %p57 = por %p55, %p56
    %p58 = scmp.ne.s32.totalorder %s47, %s48
    %p59 = scmp.eq.s32.totalorder %s18, 0
    %p60 = por %p58, %p59
    %p61 = scmp.ne.s32.totalorder %s47, %s48
    %p62 = scmp.eq.s32.totalorder %s19, 3
    %p63 = por %p61, %p62
    %p65 = scmp.ne.s32.totalorder %s48, %s64
    %p66 = scmp.eq.s32.totalorder %s19, 0
    %p67 = por %p65, %p66
    %s69 = sadd.s32 %s68, 1
    %p72 = scmp.eq.s32.totalorder %s13, 3
    %p73 = scmp.ne.s32.totalorder %s68, %s70
    %p74 = scmp.eq.s32.totalorder %s13, 0
    %p75 = por %p73, %p74
    %p76 = scmp.ne.s32.totalorder %s68, %s70
    %p77 = scmp.eq.s32.totalorder %s18, 3
    %p78 = por %p76, %p77
    %p79 = scmp.ne.s32.totalorder %s70, %s71
    %p80 = scmp.eq.s32.totalorder %s18, 0
    %p81 = por %p79, %p80
    %p82 = scmp.ne.s32.totalorder %s70, %s71
    %p83 = scmp.eq.s32.totalorder %s19, 3
    %p84 = por %p82, %p83
    %p86 = scmp.ne.s32.totalorder %s71, %s85
    %p87 = scmp.eq.s32.totalorder %s19, 0
    %p88 = por %p86, %p87
    %s90 = sadd.s32 %s89, 1
    %p93 = scmp.eq.s32.totalorder %s13, 3
    %p94 = scmp.ne.s32.totalorder %s89, %s91
    %p95 = scmp.eq.s32.totalorder %s13, 0
    %p96 = por %p94, %p95
    %p97 = scmp.ne.s32.totalorder %s89, %s91
    %p98 = scmp.eq.s32.totalorder %s18, 3
    %p99 = por %p97, %p98
    %p100 = scmp.ne.s32.totalorder %s91, %s92
    %p101 = scmp.eq.s32.totalorder %s18, 0
    %p102 = por %p100, %p101
    %p103 = scmp.ne.s32.totalorder %s91, %s92
    %p104 = scmp.eq.s32.totalorder %s19, 3
    %p105 = por %p103, %p104
    %p107 = scmp.ne.s32.totalorder %s92, %s106
    %p108 = scmp.eq.s32.totalorder %s19, 0
    %p109 = por %p107, %p108
    %s111 = sadd.s32 %s110, 1
    %p114 = scmp.eq.s32.totalorder %s13, 3
    %p115 = scmp.ne.s32.totalorder %s110, %s112
    %p116 = scmp.eq.s32.totalorder %s13, 0
    %p117 = por %p115, %p116
    %p118 = scmp.ne.s32.totalorder %s110, %s112
    %p119 = scmp.eq.s32.totalorder %s18, 3
    %p120 = por %p118, %p119
    %p121 = scmp.ne.s32.totalorder %s112, %s113
    %p122 = scmp.eq.s32.totalorder %s18, 0
    %p123 = por %p121, %p122
    %p124 = scmp.ne.s32.totalorder %s112, %s113
    %p125 = scmp.eq.s32.totalorder %s19, 3
    %p126 = por %p124, %p125
    %p128 = scmp.ne.s32.totalorder %s113, %s127
    %p129 = scmp.eq.s32.totalorder %s19, 0
    %p130 = por %p128, %p129
    %s131 = ssub.s32 %s22, %s31
    %p132 = scmp.eq.s32.totalorder %s131, 0
    %s134 = sadd.s32 %s133, 1
    %s135 = scalar_select %p132, %s133, %s134
    %p138 = pneg %p132
    %p139 = scmp.eq.s32.totalorder %s13, 3
    %p140 = por %p138, %p139
    %p141 = scmp.ne.s32.totalorder %s133, %s136
    %p142 = scmp.eq.s32.totalorder %s13, 0
    %p143 = por %p141, %p142
    %p144 = scmp.ne.s32.totalorder %s133, %s136
    %p145 = scmp.eq.s32.totalorder %s18, 3
    %p146 = por %p144, %p145
    %p147 = scmp.ne.s32.totalorder %s136, %s137
    %p148 = scmp.eq.s32.totalorder %s18, 0
    %p149 = por %p147, %p148
    %p150 = scmp.ne.s32.totalorder %s136, %s137
    %p151 = scmp.eq.s32.totalorder %s19, 3
    %p152 = por %p150, %p151
    %p154 = scmp.ne.s32.totalorder %s137, %s153
    %p155 = scmp.eq.s32.totalorder %s19, 0
    %p156 = por %p154, %p155
    %s158 = sadd.s32 %s157, 1
    %p161 = scmp.eq.s32.totalorder %s13, 3
    %p162 = scmp.ne.s32.totalorder %s157, %s159
    %p163 = scmp.eq.s32.totalorder %s13, 0
    %p164 = por %p162, %p163
    %p165 = scmp.ne.s32.totalorder %s157, %s159
    %p166 = scmp.eq.s32.totalorder %s18, 3
    %p167 = por %p165, %p166
    %p168 = scmp.ne.s32.totalorder %s159, %s160
    %p169 = scmp.eq.s32.totalorder %s18, 0
    %p170 = por %p168, %p169
    %p171 = scmp.ne.s32.totalorder %s159, %s160
    %p172 = scmp.eq.s32.totalorder %s19, 3
    %p173 = por %p171, %p172
    %p175 = scmp.ne.s32.totalorder %s160, %s174
    %p176 = scmp.eq.s32.totalorder %s19, 0
    %p177 = por %p175, %p176
    %s178 = smul.u32 %s20, %s21
    %s179 = smul.u32 %s39, %s35
    %s180 = ssub.s32 %s178, %s179
    %p181 = scmp.eq.s32.totalorder %s180, 0
    %s183 = sadd.s32 %s182, 1
    %s184 = scalar_select %p181, %s182, %s183
    %p187 = pneg %p181
    %p188 = scmp.eq.s32.totalorder %s13, 3
    %p189 = por %p187, %p188
    %p190 = scmp.ne.s32.totalorder %s182, %s185
    %p191 = scmp.eq.s32.totalorder %s13, 0
    %p192 = por %p190, %p191
    %p193 = scmp.ne.s32.totalorder %s182, %s185
    %p194 = scmp.eq.s32.totalorder %s18, 3
    %p195 = por %p193, %p194
    %p196 = scmp.ne.s32.totalorder %s185, %s186
    %p197 = scmp.eq.s32.totalorder %s18, 0
    %p198 = por %p196, %p197
    %p199 = scmp.ne.s32.totalorder %s185, %s186
    %p200 = scmp.eq.s32.totalorder %s19, 3
    %p201 = por %p199, %p200
    %p203 = scmp.ne.s32.totalorder %s186, %s202
    %p204 = scmp.eq.s32.totalorder %s19, 0
    %p205 = por %p203, %p204
    %p206 = scmp.le.s32.totalorder 1, %s13
    %p207 = scmp.lt.s32.totalorder %s13, 5
    %p208 = pnand %p206, %p207
    %p209 = pneg %p208
    // Predicated region
    $region9: #{discriminator_forward.3} parent=5 // pred_check
      _
    $region10: #{discriminator_forward.3} parent=5 // pred_check_branch
      %211 = sbr.rel (%p208) target = $region12
    $region11: #{discriminator_forward.3} parent=5 // pred_region
      %s212 = ssub.s32 %s13, 1
      // Predicated region
      $region13: #{discriminator_forward.3} parent=11 // pred_check
        %p213 = pneg %p81
      $region14: #{discriminator_forward.3} parent=11 // pred_check_branch
        %215 = sbr.rel (%p213) target = $region16
      $region15: #{discriminator_forward.3} parent=11 // pred_region
        _
      $region16: #{discriminator_forward.3} parent=11 // pred_fallthru
        _
      // Predicated region
      $region17: #{discriminator_forward.3} parent=11 // pred_check
        %p216 = pneg %p102
      $region18: #{discriminator_forward.3} parent=11 // pred_check_branch
        %218 = sbr.rel (%p216) target = $region20
      $region19: #{discriminator_forward.3} parent=11 // pred_region
        _
      $region20: #{discriminator_forward.3} parent=11 // pred_fallthru
        _
      // Predicated region
      $region21: #{discriminator_forward.3} parent=11 // pred_check
        %p219 = pneg %p123
      $region22: #{discriminator_forward.3} parent=11 // pred_check_branch
        %221 = sbr.rel (%p219) target = $region24
      $region23: #{discriminator_forward.3} parent=11 // pred_region
        _
      $region24: #{discriminator_forward.3} parent=11 // pred_fallthru
        _
      // Predicated region
      $region25: #{discriminator_forward.3} parent=11 // pred_check
        %p222 = pneg %p149
      $region26: #{discriminator_forward.3} parent=11 // pred_check_branch
        %224 = sbr.rel (%p222) target = $region28
      $region27: #{discriminator_forward.3} parent=11 // pred_region
        %s225 = smul.u32 2, %s25
        %p226 = scmp.lt.s32.totalorder %s225, 1
        %s227 = scalar_select %p226, %s225, 1
        %s228 = smul.addr %s227, 8
        %s229 = scalar_lea.vmem %s4, %s228
        %s230 = smul.u32 2, %s25
      $region28: #{discriminator_forward.3} parent=11 // pred_fallthru
        _
      // Predicated region
      $region29: #{discriminator_forward.3} parent=11 // pred_check
        %p231 = pneg %p170
      $region30: #{discriminator_forward.3} parent=11 // pred_check_branch
        %233 = sbr.rel (%p231) target = $region32
      $region31: #{discriminator_forward.3} parent=11 // pred_region
        _
      $region32: #{discriminator_forward.3} parent=11 // pred_fallthru
        _
    $region12: #{discriminator_forward.3} parent=5 // pred_fallthru
      _
    %p234 = scmp.lt.s32.totalorder %s13, 4
    // Predicated region
    $region33: #{discriminator_forward.3} parent=5 // pred_check
      %p235 = pneg %p234
    $region34: #{discriminator_forward.3} parent=5 // pred_check_branch
      %237 = sbr.rel (%p235) target = $region36
    $region35: #{discriminator_forward.3} parent=5 // pred_region
      // Predicated region
      $region37: #{discriminator_forward.3} parent=35 // pred_check
        %p238 = pneg %p54
      $region38: #{discriminator_forward.3} parent=35 // pred_check_branch
        %240 = sbr.rel (%p238) target = $region40
      $region39: #{discriminator_forward.3} parent=35 // pred_region
        %s241 = smul.u32 2, %s22
        %p242 = scmp.lt.s32.totalorder %s21, 1
        %s243 = scalar_select %p242, %s21, 1
        %p244 = scmp.lt.s32.totalorder %s241, 1
        %s245 = scalar_select %p244, %s241, 1
        %s246 = smul.addr %s245, 5
        %s247 = smul.addr %s243, 10
        %s248 = sadd.s32 %s246, %s247
        %s249 = smul.addr %s248, 4
        %s250 = scalar_lea.vmem %s0, %s249
        %s251 = smul.u32 2, %s22
      $region40: #{discriminator_forward.3} parent=35 // pred_fallthru
        _
    $region36: #{discriminator_forward.3} parent=5 // pred_fallthru
      _
    %p252 = scmp.le.s32.totalorder 1, %s13
    %p253 = scmp.lt.s32.totalorder %s13, 5
    %p254 = pnand %p252, %p253
    %p255 = pneg %p254
    // Predicated region
    $region41: #{discriminator_forward.3} parent=5 // pred_check
      _
    $region42: #{discriminator_forward.3} parent=5 // pred_check_branch
      %257 = sbr.rel (%p254) target = $region44
    $region43: #{discriminator_forward.3} parent=5 // pred_region
      %s258 = ssub.s32 %s13, 1
      %s259 = smul.u32 2, %s25
      %p260 = scmp.lt.s32.totalorder %s24, 1
      %s261 = scalar_select %p260, %s24, 1
      %p262 = scmp.lt.s32.totalorder %s259, 1
      %s263 = scalar_select %p262, %s259, 1
      %s264 = smul.addr %s263, 5
      %s265 = smul.addr %s261, 10
      %s266 = sadd.s32 %s264, %s265
      %s267 = smul.addr %s266, 4
      %s268 = scalar_lea.vmem %s0, %s267
      %p269 = pneg %p60
      %p270 = pneg %p57
      %p271 = pneg %p81
      %p272 = pneg %p78
      %p273 = pneg %p102
      %p274 = pneg %p99
      %p275 = pneg %p123
      %p276 = pneg %p120
      %s277 = smul.u32 2, %s25
      %p278 = scmp.lt.s32.totalorder %s277, 1
      %s279 = scalar_select %p278, %s277, 1
      %s280 = smul.addr %s279, 8
      %s281 = scalar_lea.vmem %s4, %s280
      %p282 = pneg %p149
      %p283 = pneg %p146
      %p284 = pneg %p170
      %p285 = pneg %p167
      %p286 = pneg %p198
      %p287 = pneg %p195
      %s288 = smul.u32 %s23, %s24
      %p289 = scmp.lt.s32.totalorder %s288, 1
      %s290 = scalar_select %p289, %s288, 1
      %s291 = smul.addr %s290, 8
      %s292 = scalar_lea.vmem %s6, %s291
      %s293 = smul.u32 2, %s25
      %p294 = scmp.lt.s32.totalorder %s24, 1
      %s295 = scalar_select %p294, %s24, 1
      %p296 = scmp.lt.s32.totalorder %s293, 1
      %s297 = scalar_select %p296, %s293, 1
      %s298 = smul.addr %s297, 5
      %s299 = smul.addr %s295, 10
      %s300 = sadd.s32 %s298, %s299
      %s301 = smul.addr %s300, 4
      %s302 = scalar_lea.vmem %s0, %s301
      %s303 = smul.u32 2, %s25
      %s304 = smul.u32 2, %s25
      %p305 = scmp.lt.s32.totalorder %s304, 1
      %s306 = scalar_select %p305, %s304, 1
      %s307 = smul.addr %s306, 8
      %s308 = scalar_lea.vmem %s4, %s307
      %s309 = smul.u32 2, %s25
      %s310 = smul.u32 %s23, %s24
      %p311 = scmp.lt.s32.totalorder %s310, 1
      %s312 = scalar_select %p311, %s310, 1
      %s313 = smul.addr %s312, 8
      %s314 = scalar_lea.vmem %s6, %s313
      %s315 = smul.u32 %s23, %s24
      %p317 = scmp.eq.s32.totalorder %s23, 0
      %p318 = scmp.eq.s32.totalorder %s24, 0
      %p319 = pnand %p317, %p318
      %p320 = pneg %p319
      %p321 = scmp.eq.s32.totalorder %s25, 0
      %p322 = pnand %p320, %p321
      %p323 = pneg %p322
      // Predicated region
      $region45: #{discriminator_forward.3} parent=43 // pred_check
        _
      $region46: #{discriminator_forward.3} parent=43 // pred_check_branch
        %325 = sbr.rel (%p322) target = $region48
      $region47: #{discriminator_forward.3} parent=43 // pred_region
        %vm326 = vcmask 517120
        %327 = vst.msk [vmem:[#allocation2] sm:$0x3] %vm326, 0.0
      $region48: #{discriminator_forward.3} parent=43 // pred_fallthru
        _
      %v328 = vld [vmem:[%s302] sm:$0xff]
      %v329 = vld [vmem:[%s302 + $0x8] sm:$0xff]
      %v330 = vld [vmem:[%s302 + $0x10] sm:$0xf]
      %v331 = vld [vmem:[%s302 + $0x14] sm:$0xff]
      %v332 = vld [vmem:[%s302 + $0x1c] sm:$0xff]
      %v333 = vld [vmem:[%s302 + $0x24] sm:$0xf]
      %v334 = vld [vmem:[%s1] sm:$0xf]
      %v335 = vld [vmem:[%s1 + $0x4] sm:$0xf]
      %v336 = vld [vmem:[%s1 + $0x8] sm:$0xf]
      %v337 = vld [vmem:[%s1 + $0xc] sm:$0xf]
      %v338 = vld [vmem:[%s1 + $0x10] sm:$0xf]
      %v339 = vld [vmem:[%s1 + $0x14] sm:$0xf]
      %v340 = vld [vmem:[%s1 + $0x18] sm:$0xf]
      %v341 = vld [vmem:[%s1 + $0x1c] sm:$0xf]
      %v342 = vld [vmem:[%s1 + $0x20] sm:$0xf]
      %v343 = vld [vmem:[%s1 + $0x24] sm:$0xf]
      %v344 = vld [vmem:[%s1 + $0x28] sm:$0xf]
      %v345 = vld [vmem:[%s1 + $0x2c] sm:$0xf]
      %v346 = vld [vmem:[%s1 + $0x30] sm:$0xf]
      %v347 = vld [vmem:[%s1 + $0x34] sm:$0xf]
      %v348 = vld [vmem:[%s1 + $0x38] sm:$0xf]
      %v349 = vld [vmem:[%s1 + $0x3c] sm:$0xf]
      %v350 = vld [vmem:[%s1 + $0x40] sm:$0xf]
      %v351 = vld [vmem:[%s1 + $0x44] sm:$0xf]
      %v352 = vld [vmem:[%s1 + $0x48] sm:$0xf]
      %v353 = vld [vmem:[%s1 + $0x4c] sm:$0xf]
      %v354 = vld [vmem:[%s1 + $0x50] sm:$0xf]
      %v355 = vld [vmem:[%s1 + $0x54] sm:$0xf]
      %v356 = vld [vmem:[%s1 + $0x58] sm:$0xf]
      %v357 = vld [vmem:[%s1 + $0x5c] sm:$0xf]
      %v358 = vld [vmem:[%s1 + $0x60] sm:$0xf]
      %v359 = vld [vmem:[%s1 + $0x64] sm:$0xf]
      %v360 = vld [vmem:[%s1 + $0x68] sm:$0xf]
      %v361 = vld [vmem:[%s1 + $0x6c] sm:$0xf]
      %v362 = vld [vmem:[%s1 + $0x70] sm:$0xf]
      %v363 = vld [vmem:[%s1 + $0x74] sm:$0xf]
      %v364 = vld [vmem:[%s1 + $0x78] sm:$0xf]
      %v365 = vld [vmem:[%s1 + $0x7c] sm:$0xf]
      %v366 = vld [vmem:[%s1 + $0x80] sm:$0xf]
      %v367 = vld [vmem:[%s1 + $0x84] sm:$0xf]
      %v368 = vld [vmem:[%s1 + $0x88] sm:$0xf]
      %v369 = vld [vmem:[%s1 + $0x8c] sm:$0xf]
      %v370 = vld [vmem:[%s1 + $0x90] sm:$0xf]
      %v371 = vld [vmem:[%s1 + $0x94] sm:$0xf]
      %v372 = vld [vmem:[%s1 + $0x98] sm:$0xf]
      %v373 = vld [vmem:[%s1 + $0x9c] sm:$0xf]
      %v374 = vld [vmem:[%s1 + $0xa0] sm:$0xf]
      %v375 = vld [vmem:[%s1 + $0xa4] sm:$0xf]
      %v376 = vld [vmem:[%s1 + $0xa8] sm:$0xf]
      %v377 = vld [vmem:[%s1 + $0xac] sm:$0xf]
      %v378 = vld [vmem:[%s1 + $0xb0] sm:$0xf]
      %v379 = vld [vmem:[%s1 + $0xb4] sm:$0xf]
      %v380 = vld [vmem:[%s1 + $0xb8] sm:$0xf]
      %v381 = vld [vmem:[%s1 + $0xbc] sm:$0xf]
      %v382 = vld [vmem:[%s1 + $0xc0] sm:$0xf]
      %v383 = vld [vmem:[%s1 + $0xc4] sm:$0xf]
      %v384 = vld [vmem:[%s1 + $0xc8] sm:$0xf]
      %v385 = vld [vmem:[%s1 + $0xcc] sm:$0xf]
      %v386 = vld [vmem:[%s1 + $0xd0] sm:$0xf]
      %v387 = vld [vmem:[%s1 + $0xd4] sm:$0xf]
      %v388 = vld [vmem:[%s1 + $0xd8] sm:$0xf]
      %v389 = vld [vmem:[%s1 + $0xdc] sm:$0xf]
      %v390 = vld [vmem:[%s1 + $0xe0] sm:$0xf]
      %v391 = vld [vmem:[%s1 + $0xe4] sm:$0xf]
      %v392 = vld [vmem:[%s1 + $0xe8] sm:$0xf]
      %v393 = vld [vmem:[%s1 + $0xec] sm:$0xf]
      %v394 = vld [vmem:[%s1 + $0xf0] sm:$0xf]
      %v395 = vld [vmem:[%s1 + $0xf4] sm:$0xf]
      %v396 = vld [vmem:[%s1 + $0xf8] sm:$0xf]
      %v397 = vld [vmem:[%s1 + $0xfc] sm:$0xf]
      %v398 = vld [vmem:[%s1 + $0x100] sm:$0xf]
      %v399 = vld [vmem:[%s1 + $0x104] sm:$0xf]
      %v400 = vld [vmem:[%s1 + $0x108] sm:$0xf]
      %v401 = vld [vmem:[%s1 + $0x10c] sm:$0xf]
      %v402 = vld [vmem:[%s1 + $0x110] sm:$0xf]
      %v403 = vld [vmem:[%s1 + $0x114] sm:$0xf]
      %v404 = vld [vmem:[%s1 + $0x118] sm:$0xf]
      %v405 = vld [vmem:[%s1 + $0x11c] sm:$0xf]
      %v412 = vunpack.c.l.b16 %v328
      %v413 = vunpack.c.h.b16 %v328
      %v414 = vunpack.c.l.b16 %v329
      %v415 = vunpack.c.h.b16 %v329
      %v416 = vunpack.c.l.b16 %v330
      %v417 = vunpack.c.l.b16 %v331
      %v418 = vunpack.c.h.b16 %v331
      %v419 = vunpack.c.l.b16 %v332
      %v420 = vunpack.c.h.b16 %v332
      %v421 = vunpack.c.l.b16 %v333
      %v422 = vpack.c.b16 %v417, %v412
      %v423 = vpack.c.b16 %v418, %v413
      %v424 = vpack.c.b16 %v419, %v414
      %v425 = vpack.c.b16 %v420, %v415
      %v426 = vpack.c.b16 %v421, %v416
      %v503 = vunpack.c.l.b16 %v334
      %v504 = vunpack.c.l.b16 %v335
      %v505 = vunpack.c.l.b16 %v336
      %v506 = vunpack.c.l.b16 %v337
      %v507 = vunpack.c.l.b16 %v338
      %v508 = vunpack.c.l.b16 %v339
      %v509 = vunpack.c.l.b16 %v340
      %v510 = vunpack.c.l.b16 %v341
      %v511 = vunpack.c.l.b16 %v342
      %v512 = vunpack.c.l.b16 %v343
      %v513 = vunpack.c.l.b16 %v344
      %v514 = vunpack.c.l.b16 %v345
      %v515 = vunpack.c.l.b16 %v346
      %v516 = vunpack.c.l.b16 %v347
      %v517 = vunpack.c.l.b16 %v348
      %v518 = vunpack.c.l.b16 %v349
      %v519 = vunpack.c.l.b16 %v350
      %v520 = vunpack.c.l.b16 %v351
      %v521 = vunpack.c.l.b16 %v352
      %v522 = vunpack.c.l.b16 %v353
      %v523 = vunpack.c.l.b16 %v354
      %v524 = vunpack.c.l.b16 %v355
      %v525 = vunpack.c.l.b16 %v356
      %v526 = vunpack.c.l.b16 %v357
      %v527 = vunpack.c.l.b16 %v358
      %v528 = vunpack.c.l.b16 %v359
      %v529 = vunpack.c.l.b16 %v360
      %v530 = vunpack.c.l.b16 %v361
      %v531 = vunpack.c.l.b16 %v362
      %v532 = vunpack.c.l.b16 %v363
      %v533 = vunpack.c.l.b16 %v364
      %v534 = vunpack.c.l.b16 %v365
      %v535 = vunpack.c.l.b16 %v366
      %v536 = vunpack.c.l.b16 %v367
      %v537 = vunpack.c.l.b16 %v368
      %v538 = vunpack.c.l.b16 %v369
      %v539 = vunpack.c.l.b16 %v370
      %v540 = vunpack.c.l.b16 %v371
      %v541 = vunpack.c.l.b16 %v372
      %v542 = vunpack.c.l.b16 %v373
      %v543 = vunpack.c.l.b16 %v374
      %v544 = vunpack.c.l.b16 %v375
      %v545 = vunpack.c.l.b16 %v376
      %v546 = vunpack.c.l.b16 %v377
      %v547 = vunpack.c.l.b16 %v378
      %v548 = vunpack.c.l.b16 %v379
      %v549 = vunpack.c.l.b16 %v380
      %v550 = vunpack.c.l.b16 %v381
      %v551 = vunpack.c.l.b16 %v382
      %v552 = vunpack.c.l.b16 %v383
      %v553 = vunpack.c.l.b16 %v384
      %v554 = vunpack.c.l.b16 %v385
      %v555 = vunpack.c.l.b16 %v386
      %v556 = vunpack.c.l.b16 %v387
      %v557 = vunpack.c.l.b16 %v388
      %v558 = vunpack.c.l.b16 %v389
      %v559 = vunpack.c.l.b16 %v390
      %v560 = vunpack.c.l.b16 %v391
      %v561 = vunpack.c.l.b16 %v392
      %v562 = vunpack.c.l.b16 %v393
      %v563 = vunpack.c.l.b16 %v394
      %v564 = vunpack.c.l.b16 %v395
      %v565 = vunpack.c.l.b16 %v396
      %v566 = vunpack.c.l.b16 %v397
      %v567 = vunpack.c.l.b16 %v398
      %v568 = vunpack.c.l.b16 %v399
      %v569 = vunpack.c.l.b16 %v400
      %v570 = vunpack.c.l.b16 %v401
      %v571 = vunpack.c.l.b16 %v402
      %v572 = vunpack.c.l.b16 %v403
      %v573 = vunpack.c.l.b16 %v404
      %v574 = vunpack.c.l.b16 %v405
      %v575 = vpack.c.b16 %v504, %v503
      %v576 = vpack.c.b16 %v506, %v505
      %v577 = vpack.c.b16 %v508, %v507
      %v578 = vpack.c.b16 %v510, %v509
      %v579 = vpack.c.b16 %v512, %v511
      %v580 = vpack.c.b16 %v514, %v513
      %v581 = vpack.c.b16 %v516, %v515
      %v582 = vpack.c.b16 %v518, %v517
      %v583 = vpack.c.b16 %v520, %v519
      %v584 = vpack.c.b16 %v522, %v521
      %v585 = vpack.c.b16 %v524, %v523
      %v586 = vpack.c.b16 %v526, %v525
      %v587 = vpack.c.b16 %v528, %v527
      %v588 = vpack.c.b16 %v530, %v529
      %v589 = vpack.c.b16 %v532, %v531
      %v590 = vpack.c.b16 %v534, %v533
      %v591 = vpack.c.b16 %v536, %v535
      %v592 = vpack.c.b16 %v538, %v537
      %v593 = vpack.c.b16 %v540, %v539
      %v594 = vpack.c.b16 %v542, %v541
      %v595 = vpack.c.b16 %v544, %v543
      %v596 = vpack.c.b16 %v546, %v545
      %v597 = vpack.c.b16 %v548, %v547
      %v598 = vpack.c.b16 %v550, %v549
      %v599 = vpack.c.b16 %v552, %v551
      %v600 = vpack.c.b16 %v554, %v553
      %v601 = vpack.c.b16 %v556, %v555
      %v602 = vpack.c.b16 %v558, %v557
      %v603 = vpack.c.b16 %v560, %v559
      %v604 = vpack.c.b16 %v562, %v561
      %v605 = vpack.c.b16 %v564, %v563
      %v606 = vpack.c.b16 %v566, %v565
      %v607 = vpack.c.b16 %v568, %v567
      %v608 = vpack.c.b16 %v570, %v569
      %v609 = vpack.c.b16 %v572, %v571
      %v610 = vpack.c.b16 %v574, %v573
      %vm647 = vcmask 523264
      %v649 = vsel %vm647, %v426, 0
      %651 = vmatprep.subr.bf16.mxu0 0
      %652 = vmatpush1.bf16.msra.mxu0 %v575
      %653 = vmatprep.subr.bf16.mxu0 0
      %654 = vmatpush1.bf16.msra.mxu0 %v576
      %655 = vmatprep.subr.bf16.mxu0 0
      %656 = vmatpush1.bf16.msra.mxu0 %v577
      %657 = vmatprep.subr.bf16.mxu0 0
      %658 = vmatpush1.bf16.msra.mxu0 %v578
      %659 = vmatprep.subr.bf16.mxu0 0
      %660 = vmatpush1.bf16.msra.mxu0 %v579
      %661 = vmatprep.subr.bf16.mxu0 0
      %662 = vmatpush1.bf16.msra.mxu0 %v580
      %663 = vmatprep.subr.bf16.mxu0 0
      %664 = vmatpush1.bf16.msra.mxu0 %v581
      %665 = vmatprep.subr.bf16.mxu0 0
      %666 = vmatpush1.bf16.msra.mxu0 %v582
      %667 = vmatprep.subr.bf16.mxu0 0
      %668 = vmatpush1.bf16.msra.mxu0 %v583
      %669 = vmatprep.subr.bf16.mxu0 0
      %670 = vmatpush1.bf16.msra.mxu0 %v584
      %671 = vmatprep.subr.bf16.mxu0 0
      %672 = vmatpush1.bf16.msra.mxu0 %v585
      %673 = vmatprep.subr.bf16.mxu0 0
      %674 = vmatpush1.bf16.msra.mxu0 %v586
      %675 = vmatprep.subr.bf16.mxu0 0
      %676 = vmatpush1.bf16.msra.mxu0 %v587
      %677 = vmatprep.subr.bf16.mxu0 0
      %678 = vmatpush1.bf16.msra.mxu0 %v588
      %679 = vmatprep.subr.bf16.mxu0 0
      %680 = vmatpush1.bf16.msra.mxu0 %v589
      %681 = vmatprep.subr.bf16.mxu0 0
      %682 = vmatpush1.bf16.msra.mxu0 %v590
      %683 = vmatprep.mubr.bf16.mxu0 %v423
      %684 = vmatmul.mubr.bf16.gmra.mrb[0].mxu0 %v422
      %v685 = vpop.f32.mrb[0].mxu0
      %v686 = vadd.f32 0.0, %v685
      %v687 = vpop.f32.mrb[0].mxu0
      %v688 = vpop.f32.mrb[0].mxu0
      %v689 = vadd.f32 0.0, %v688
      %v690 = vpop.f32.mrb[0].mxu0
      %691 = vdwg.mxu0
      %692 = vmatprep.subr.bf16.mxu0 0
      %693 = vmatpush1.bf16.msra.mxu0 %v591
      %694 = vmatprep.subr.bf16.mxu0 0
      %695 = vmatpush1.bf16.msra.mxu0 %v592
      %696 = vmatprep.subr.bf16.mxu0 0
      %697 = vmatpush1.bf16.msra.mxu0 %v593
      %698 = vmatprep.subr.bf16.mxu0 0
      %699 = vmatpush1.bf16.msra.mxu0 %v594
      %700 = vmatprep.subr.bf16.mxu0 0
      %701 = vmatpush1.bf16.msra.mxu0 %v595
      %702 = vmatprep.subr.bf16.mxu0 0
      %703 = vmatpush1.bf16.msra.mxu0 %v596
      %704 = vmatprep.subr.bf16.mxu0 0
      %705 = vmatpush1.bf16.msra.mxu0 %v597
      %706 = vmatprep.subr.bf16.mxu0 0
      %707 = vmatpush1.bf16.msra.mxu0 %v598
      %708 = vmatprep.subr.bf16.mxu0 0
      %709 = vmatpush1.bf16.msra.mxu0 %v599
      %710 = vmatprep.subr.bf16.mxu0 0
      %711 = vmatpush1.bf16.msra.mxu0 %v600
      %712 = vmatprep.subr.bf16.mxu0 0
      %713 = vmatpush1.bf16.msra.mxu0 %v601
      %714 = vmatprep.subr.bf16.mxu0 0
      %715 = vmatpush1.bf16.msra.mxu0 %v602
      %716 = vmatprep.subr.bf16.mxu0 0
      %717 = vmatpush1.bf16.msra.mxu0 %v603
      %718 = vmatprep.subr.bf16.mxu0 0
      %719 = vmatpush1.bf16.msra.mxu0 %v604
      %720 = vmatprep.subr.bf16.mxu0 0
      %721 = vmatpush1.bf16.msra.mxu0 %v605
      %722 = vmatprep.subr.bf16.mxu0 0
      %723 = vmatpush1.bf16.msra.mxu0 %v606
      %724 = vmatprep.mubr.bf16.mxu0 %v425
      %725 = vmatmul.mubr.bf16.gmra.mrb[0].mxu0 %v424
      %v726 = vpop.f32.mrb[0].mxu0
      %v727 = vadd.f32 %v686, %v726
      %v728 = vpop.f32.mrb[0].mxu0
      %v729 = vpop.f32.mrb[0].mxu0
      %v730 = vadd.f32 %v689, %v729
      %v731 = vpop.f32.mrb[0].mxu0
      %732 = vdwg.mxu0
      %733 = vmatprep.subr.bf16.mxu0 0
      %734 = vmatpush1.bf16.msra.mxu0 %v607
      %735 = vmatprep.subr.bf16.mxu0 0
      %736 = vmatpush1.bf16.msra.mxu0 %v608
      %737 = vmatprep.subr.bf16.mxu0 0
      %738 = vmatpush1.bf16.msra.mxu0 %v609
      %739 = vmatprep.subr.bf16.mxu0 0
      %740 = vmatpush1.bf16.msra.mxu0 %v610
      %741 = vmatprep.subr.bf16.mxu0 0
      %742 = vmatpush1.bf16.msra.mxu0 0
      %743 = vmatprep.subr.bf16.mxu0 0
      %744 = vmatpush1.bf16.msra.mxu0 0
      %745 = vmatprep.subr.bf16.mxu0 0
      %746 = vmatpush1.bf16.msra.mxu0 0
      %747 = vmatprep.subr.bf16.mxu0 0
      %748 = vmatpush1.bf16.msra.mxu0 0
      %749 = vmatprep.subr.bf16.mxu0 0
      %750 = vmatpush1.bf16.msra.mxu0 0
      %751 = vmatprep.subr.bf16.mxu0 0
      %752 = vmatpush1.bf16.msra.mxu0 0
      %753 = vmatprep.subr.bf16.mxu0 0
      %754 = vmatpush1.bf16.msra.mxu0 0
      %755 = vmatprep.subr.bf16.mxu0 0
      %756 = vmatpush1.bf16.msra.mxu0 0
      %757 = vmatprep.subr.bf16.mxu0 0
      %758 = vmatpush1.bf16.msra.mxu0 0
      %759 = vmatprep.subr.bf16.mxu0 0
      %760 = vmatpush1.bf16.msra.mxu0 0
      %761 = vmatprep.subr.bf16.mxu0 0
      %762 = vmatpush1.bf16.msra.mxu0 0
      %763 = vmatprep.subr.bf16.mxu0 0
      %764 = vmatpush1.bf16.msra.mxu0 0
      %765 = vmatprep.mubr.bf16.mxu0 0
      %766 = vmatmul.mubr.bf16.gmra.mrb[0].mxu0 %v649
      %v767 = vpop.f32.mrb[0].mxu0
      %v768 = vadd.f32 %v727, %v767
      %v769 = vpop.f32.mrb[0].mxu0
      %v770 = vpop.f32.mrb[0].mxu0
      %v771 = vadd.f32 %v730, %v770
      %v772 = vpop.f32.mrb[0].mxu0
      %773 = vdwg.mxu0
      // Predicated region
      $region49: #{discriminator_forward.3} parent=43 // pred_check
        %p774 = pneg %p317
      $region50: #{discriminator_forward.3} parent=43 // pred_check_branch
        %776 = sbr.rel (%p774) target = $region52
      $region51: #{discriminator_forward.3} parent=43 // pred_region
        %v777 = vld [vmem:[#allocation2] sm:$0x1]
        %v778 = vsel %vm647, %v768, 0.0
        %v779 = vsel %vm647, %v771, 0.0
        %v780 = vadd.f32 %v778, %v779
        %v781 = vrot.slane %v780, 4
        %v782 = vadd.f32 %v780, %v781
        %v783 = vrot.slane %v782, 2
        %v784 = vadd.f32 %v782, %v783
        %v785 = vrot.slane %v784, 1
        %v786 = vadd.f32 %v784, %v785
        %v787 = vadd.f32 %v777, %v786
        %vm788 = vcmask 516096
        %789 = vst.msk [vmem:[#allocation2] sm:$0x1] %vm788, %v787
        %v790 = vld [vmem:[#allocation2 + $0x1] sm:$0x1]
        %v791 = vmul.f32 %v768, %v768
        %v792 = vmul.f32 %v771, %v771
        %v793 = vsel %vm647, %v791, 0.0
        %v794 = vsel %vm647, %v792, 0.0
        %v795 = vadd.f32 %v793, %v794
        %v796 = vrot.slane %v795, 4
        %v797 = vadd.f32 %v795, %v796
        %v798 = vrot.slane %v797, 2
        %v799 = vadd.f32 %v797, %v798
        %v800 = vrot.slane %v799, 1
        %v801 = vadd.f32 %v799, %v800
        %v802 = vadd.f32 %v790, %v801
        %803 = vst.msk [vmem:[#allocation2 + $0x1] sm:$0x1] %vm788, %v802
      $region52: #{discriminator_forward.3} parent=43 // pred_fallthru
        _
      %p804 = scmp.eq.s32.totalorder %s23, 1
      %p805 = pnand %p804, %p321
      %p806 = pneg %p805
      // Predicated region
      $region53: #{discriminator_forward.3} parent=43 // pred_check
        _
      $region54: #{discriminator_forward.3} parent=43 // pred_check_branch
        %808 = sbr.rel (%p805) target = $region56
      $region55: #{discriminator_forward.3} parent=43 // pred_region
        %809 = vst [vmem:[%s314] sm:$0xff] 0.0
      $region56: #{discriminator_forward.3} parent=43 // pred_fallthru
        _
      // Predicated region
      $region57: #{discriminator_forward.3} parent=43 // pred_check
        %p810 = pneg %p804
      $region58: #{discriminator_forward.3} parent=43 // pred_check_branch
        %812 = sbr.rel (%p810) target = $region60
      $region59: #{discriminator_forward.3} parent=43 // pred_region
        %v813 = vld [vmem:[#allocation2] sm:$0x1]
        %v814 = vmul.f32 %v813, 0.03125
        %v815 = vld [vmem:[#allocation2 + $0x1] sm:$0x1]
        %v816 = vmul.f32 %v815, 0.03125
        %v817 = vmul.f32 %v814, %v814
        %v818 = vsub.f32 %v816, %v817
        %v819 = vmax.f32 %v818, 0.0
        %v820 = vld [vmem:[%s2] sm:$0x1]
        %v821 = vadd.f32 %v819, 1e-05
        %v822 = vrsqrt.pop %v821
        %v823 = vmul.f32 %v820, %v822
        %v824 = vld [vmem:[%s3] sm:$0x1]
        %v825 = vmul.f32 %v814, %v823
        %v826 = vsub.f32 %v824, %v825
        %v828 = vlaneseq
        %v829 = vshrl.u32 %v828, 7
        %v830 = vsub.s32 0, %v829
        %v831 = vrot.slane %v823, %v830
        %v833 = vmul.f32 %v768, %v831
        %v834 = vmul.f32 %v771, %v831
        %v836 = vlaneseq
        %v837 = vshrl.u32 %v836, 7
        %v838 = vsub.s32 0, %v837
        %v839 = vrot.slane %v826, %v838
        %v841 = vadd.f32 %v833, %v839
        %v842 = vadd.f32 %v834, %v839
        %vm843 = vcmp.ge.f32.partialorder %v841, 0.0
        %vm844 = vcmp.ge.f32.partialorder %v842, 0.0
        %v845 = vmul.f32 %v841, 0.2
        %v846 = vmul.f32 %v842, 0.2
        %v847 = vsel %vm843, %v841, %v845
        %v848 = vsel %vm844, %v842, %v846
        %v849 = vld [vmem:[%s314] sm:$0xff]
        %v850 = vld [vmem:[%s308] sm:$0xff]
        %v851 = vld [vmem:[%s308 + $0x8] sm:$0xff]
        %v852 = vmul.f32 %v847, %v850
        %v853 = vmul.f32 %v848, %v851
        %v854 = vsel %vm647, %v852, 0.0
        %v855 = vsel %vm647, %v853, 0.0
        %v856 = vadd.f32 %v854, %v855
        %857 = vadd.xlane.f32.xlu0 %v856
        %v858 = vpop.xlane.xlu0 %857
        %v859 = vrot.slane %v858, 4
        %v860 = vadd.f32 %v858, %v859
        %v861 = vrot.slane %v860, 2
        %v862 = vadd.f32 %v860, %v861
        %v863 = vrot.slane %v862, 1
        %v864 = vadd.f32 %v862, %v863
        %s865 = vtos %v864
        %v866 = vstv %s865
        %v867 = vadd.f32 %v849, %v866
        %868 = vst [vmem:[%s314] sm:$0xff] %v867
      $region60: #{discriminator_forward.3} parent=43 // pred_fallthru
        _
      // Predicated region
      $region61: #{discriminator_forward.3} parent=43 // pred_check
        _
      $region62: #{discriminator_forward.3} parent=43 // pred_check_branch
        %870 = sbr.rel (%p805) target = $region64
      $region63: #{discriminator_forward.3} parent=43 // pred_region
        %v871 = vld [vmem:[%s314] sm:$0xff]
        %s872 = sld [smem:[#allocation3]]
        %v873 = vstv %s872
        %v874 = vadd.f32 %v871, %v873
        %v875 = vsub.f32 0.0, %v874
        %v876 = vmul.f32 %v875, 1.442695
        %v877 = vpow.pop %v876
        %v878 = vadd.f32 %v877, 1.0
        %v879 = vrcp.pop %v878
        %v880 = vmul.f32 1.0, %v879
        %881 = vst [vmem:[%s314] sm:$0xff] %v880
      $region64: #{discriminator_forward.3} parent=43 // pred_fallthru
        _
      %s882 = smul.u32 %s23, %s24
      %p883 = scmp.lt.s32.totalorder %s882, 1
      %s884 = scalar_select %p883, %s882, 1
      %s885 = smul.addr %s884, 8
      %s886 = scalar_lea.vmem %s6, %s885
      // Predicated region
      $region65: #{discriminator_forward.3} parent=43 // pred_check
        %p887 = pneg %p195
      $region66: #{discriminator_forward.3} parent=43 // pred_check_branch
        %889 = sbr.rel (%p887) target = $region68
      $region67: #{discriminator_forward.3} parent=43 // pred_region
        %s890 = smul.u32 %s23, %s24
      $region68: #{discriminator_forward.3} parent=43 // pred_fallthru
        _
    $region44: #{discriminator_forward.3} parent=5 // pred_fallthru
      _
    %p891 = scmp.le.s32.totalorder 2, %s13
    // Predicated region
    $region69: #{discriminator_forward.3} parent=5 // pred_check
      %p892 = pneg %p891
    $region70: #{discriminator_forward.3} parent=5 // pred_check_branch
      %894 = sbr.rel (%p892) target = $region72
    $region71: #{discriminator_forward.3} parent=5 // pred_region
      %s895 = ssub.s32 %s13, 2
      // Predicated region
      $region73: #{discriminator_forward.3} parent=71 // pred_check
        %p896 = pneg %p201
      $region74: #{discriminator_forward.3} parent=71 // pred_check_branch
        %898 = sbr.rel (%p896) target = $region76
      $region75: #{discriminator_forward.3} parent=71 // pred_region
        %s899 = smul.u32 %s26, %s27
        %p900 = scmp.lt.s32.totalorder %s899, 1
        %s901 = scalar_select %p900, %s899, 1
        %s902 = smul.addr %s901, 8
        %s903 = scalar_lea.vmem %s6, %s902
      $region76: #{discriminator_forward.3} parent=71 // pred_fallthru
        _
    $region72: #{discriminator_forward.3} parent=5 // pred_fallthru
      _
  $region6: #{discriminator_forward.3} parent=0 // loop_footer
    %s17 = sadd.s32 1, %s13
  $region7: #{discriminator_forward.3} parent=0 // loop_footer_branch
    %12 = sbr.rel target = $region3
  $region8: #{discriminator_forward.3} parent=0 // loop_exit
    _

</llo_original>
